<compile_context>
chip_gen: v7x
topology: tpu7x:2x2x1
jax: 0.10.0
libtpu: 0.0.40
codegen_flags: <defaults>
</compile_context>

<pallas_src>
import functools

import jax
import jax.numpy as jnp
from jax.experimental import pallas as pl
from jax.experimental.pallas import tpu as pltpu

EPS = 1e-5


def fused_kernel(scale_ref, x79_ref, w_ref, gamma_ref, beta_ref, x73_ref,
                 out_ref, *, inv_p):
    # per-channel sigmoid gate, broadcast multiply over the lane axis
    gate = jax.nn.sigmoid(scale_ref[...])                   # (C_in, 1)
    x85 = gate * x79_ref[...]                               # (C_in, P_pad)

    # 1x1 conv == channel-mixing matmul on the MXU (this block's out-channels)
    x86 = jnp.dot(w_ref[...], x85,
                  preferred_element_type=jnp.float32)       # (C_blk, P_pad)

    # BatchNorm2d (training mode, biased variance) folded to a single pass.
    # Padded lanes of x86 are exactly zero, so sums over P_pad equal sums
    # over the true P; divide by the true element count via inv_p.
    s1 = jnp.sum(x86, axis=1, keepdims=True)                # (C_blk, 1)
    s2 = jnp.sum(x86 * x86, axis=1, keepdims=True)          # (C_blk, 1)
    mean = s1 * inv_p
    var = s2 * inv_p - mean * mean
    a = gamma_ref[...] * jax.lax.rsqrt(var + EPS)           # (C_blk, 1)
    b = beta_ref[...] - a * mean                            # (C_blk, 1)

    # residual add, fused with the affine BN transform
    out_ref[...] = x73_ref[...] + a * x86 + b
    # TODO(synk): BatchNorm running_mean / running_var buffer updates are not
    # reproduced (they do not affect the returned forward value).


@jax.jit
def fused_forward(x83, x79, x73, conv_w, gamma, beta):
    """x83: (N, C, 1, 1); x79, x73: (N, C, H, W); conv_w: (C, C, 1, 1)."""
    N, C, H, W = x79.shape
    P = N * H * W
    P_pad = ((P + 127) // 128) * 128                        # 196 -> 256

    # NCHW -> (C, P) then zero-pad lanes to a multiple of 128.
    # NOTE: the per-channel gate broadcast assumes N == 1 (true for this module).
    def to_cp(x):
        m = jnp.transpose(x, (1, 0, 2, 3)).reshape(C, P)
        return jnp.pad(m, ((0, 0), (0, P_pad - P)))

    x79_m = to_cp(x79)
    x73_m = to_cp(x73)
    scale = x83.reshape(N, C).T.reshape(C, N)               # N == 1 -> (C, 1)
    w = conv_w.reshape(C, C)
    gamma2 = gamma.reshape(C, 1)
    beta2 = beta.reshape(C, 1)

    # 2-way split over output channels: exact for BN (per-out-channel stats).
    n_blk = 2
    c_blk = C // n_blk                                      # 160

    kernel = functools.partial(fused_kernel, inv_p=1.0 / P)

    out = pl.pallas_call(
        kernel,
        out_shape=jax.ShapeDtypeStruct((C, P_pad), jnp.float32),
        grid=(n_blk,),
        in_specs=[
            pl.BlockSpec((C, 1), lambda i: (0, 0)),          # sigmoid input (full)
            pl.BlockSpec((C, P_pad), lambda i: (0, 0)),      # x79 (full: conv K dim)
            pl.BlockSpec((c_blk, C), lambda i: (i, 0)),      # conv weight (split C_out)
            pl.BlockSpec((c_blk, 1), lambda i: (i, 0)),      # bn gamma
            pl.BlockSpec((c_blk, 1), lambda i: (i, 0)),      # bn beta
            pl.BlockSpec((c_blk, P_pad), lambda i: (i, 0)),  # x73 residual
        ],
        out_specs=pl.BlockSpec((c_blk, P_pad), lambda i: (i, 0)),
        input_output_aliases={5: 0},                         # reuse x73_m buffer for out
        compiler_params=pltpu.CompilerParams(
            dimension_semantics=("parallel",)),
    )(scale, x79_m, w, gamma2, beta2, x73_m)

    # strip lane padding, (C, P) -> NCHW
    out = out[:, :P]
    return jnp.transpose(out.reshape(C, N, H, W), (1, 0, 2, 3))


def reference_forward(x83, x79, x73, conv_w, gamma, beta):
    """Pure-JAX reference for correctness check."""
    C = x79.shape[1]
    x85 = jax.nn.sigmoid(x83) * x79
    x86 = jnp.einsum("oc,nchw->nohw", conv_w.reshape(C, C), x85)
    mean = jnp.mean(x86, axis=(0, 2, 3), keepdims=True)
    var = jnp.mean((x86 - mean) ** 2, axis=(0, 2, 3), keepdims=True)
    x87 = gamma.reshape(1, -1, 1, 1) * (x86 - mean) * jax.lax.rsqrt(var + EPS) \
        + beta.reshape(1, -1, 1, 1)
    return x73 + x87


if __name__ == "__main__":
    N, C, H, W = 1, 320, 14, 14
    key = jax.random.PRNGKey(0)
    k1, k2, k3, k4 = jax.random.split(key, 4)

    # inputs (match the module's tensor shapes)
    x73 = jax.random.normal(k1, (N, C, H, W), dtype=jnp.float32)
    x79 = jax.random.normal(k2, (N, C, H, W), dtype=jnp.float32)
    x83 = jax.random.normal(k3, (N, C, 1, 1), dtype=jnp.float32)

    # deterministic parameter init
    conv_w = jax.random.normal(k4, (C, C, 1, 1), dtype=jnp.float32) * 0.05
    gamma = jnp.ones((C,), dtype=jnp.float32)     # PyTorch BN default weight
    beta = jnp.zeros((C,), dtype=jnp.float32)     # PyTorch BN default bias

    out = fused_forward(x83, x79, x73, conv_w, gamma, beta)
    jax.block_until_ready(out)

    ref = reference_forward(x83, x79, x73, conv_w, gamma, beta)
    assert out.shape == (N, C, H, W)
    assert jnp.allclose(out, ref, atol=1e-3, rtol=1e-3), "mismatch vs reference"

    print("KERNEL_OK")
</pallas_src>

<mosaic_0001>
module attributes {stable_mosaic.version = 11 : i64} {
  func.func @fused_kernel(%arg0: i32, %arg1: memref<320x1xf32, #tpu.memory_space<vmem>>, %arg2: memref<320x256xf32, #tpu.memory_space<vmem>>, %arg3: memref<160x320xf32, #tpu.memory_space<vmem>>, %arg4: memref<160x1xf32, #tpu.memory_space<vmem>>, %arg5: memref<160x1xf32, #tpu.memory_space<vmem>>, %arg6: memref<160x256xf32, #tpu.memory_space<vmem>>, %arg7: memref<160x256xf32, #tpu.memory_space<vmem>>) attributes {dimension_semantics = [#tpu.dimension_semantics<parallel>], iteration_bounds = array<i64: 2>, scalar_prefetch = 0 : i64, scratch_operands = 0 : i64, tpu.core_type = #tpu.core_type<tc>, window_params = [{pipeline_mode = #tpu.pipeline_mode<synchronous>, transform_indices = @transform_0, window_bounds = array<i64: 320, 1>}, {pipeline_mode = #tpu.pipeline_mode<synchronous>, transform_indices = @transform_1, window_bounds = array<i64: 320, 256>}, {transform_indices = @transform_2, window_bounds = array<i64: 160, 320>}, {transform_indices = @transform_3, window_bounds = array<i64: 160, 1>}, {transform_indices = @transform_4, window_bounds = array<i64: 160, 1>}, {transform_indices = @transform_5, window_bounds = array<i64: 160, 256>}, {transform_indices = @transform_6, window_bounds = array<i64: 160, 256>}]} {
    %c0 = arith.constant 0 : index
    %c0_0 = arith.constant 0 : index
    %0 = vector.load %arg1[%c0, %c0_0] : memref<320x1xf32, #tpu.memory_space<vmem>>, vector<320x1xf32>
    %1 = arith.negf %0 : vector<320x1xf32>
    %2 = math.exp %1 : vector<320x1xf32>
    %cst = arith.constant 1.000000e+00 : f32
    %3 = vector.broadcast %cst : f32 to vector<320x1xf32>
    %4 = arith.addf %3, %2 : vector<320x1xf32>
    %5 = arith.divf %3, %4 : vector<320x1xf32>
    %c0_1 = arith.constant 0 : index
    %c0_2 = arith.constant 0 : index
    %6 = vector.load %arg2[%c0_1, %c0_2] : memref<320x256xf32, #tpu.memory_space<vmem>>, vector<320x256xf32>
    %7 = vector.broadcast %5 : vector<320x1xf32> to vector<320x256xf32>
    %8 = arith.mulf %7, %6 : vector<320x256xf32>
    %c0_3 = arith.constant 0 : index
    %c0_4 = arith.constant 0 : index
    %9 = vector.load %arg3[%c0_3, %c0_4] : memref<160x320xf32, #tpu.memory_space<vmem>>, vector<160x320xf32>
    %cst_5 = arith.constant dense<0.000000e+00> : vector<160x256xf32>
    %10 = tpu.matmul %9, %8, %cst_5 {dimension_numbers = #tpu.dot_dimension_numbers<[1], [0], [0], [1], [0, 0, 1, 1], [], []>} : vector<160x320xf32>, vector<320x256xf32>, vector<160x256xf32> -> vector<160x256xf32>
    %cst_6 = arith.constant dense<0.000000e+00> : vector<160xf32>
    %11 = vector.multi_reduction <add>, %10, %cst_6 [1] : vector<160x256xf32> to vector<160xf32>
    %12 = vector.shape_cast %11 : vector<160xf32> to vector<160x1xf32>
    %13 = arith.mulf %10, %10 : vector<160x256xf32>
    %cst_7 = arith.constant dense<0.000000e+00> : vector<160xf32>
    %14 = vector.multi_reduction <add>, %13, %cst_7 [1] : vector<160x256xf32> to vector<160xf32>
    %15 = vector.shape_cast %14 : vector<160xf32> to vector<160x1xf32>
    %cst_8 = arith.constant 0.00510204071 : f32
    %16 = vector.broadcast %cst_8 : f32 to vector<160x1xf32>
    %17 = arith.mulf %12, %16 : vector<160x1xf32>
    %cst_9 = arith.constant 0.00510204071 : f32
    %18 = vector.broadcast %cst_9 : f32 to vector<160x1xf32>
    %19 = arith.mulf %15, %18 : vector<160x1xf32>
    %20 = arith.mulf %17, %17 : vector<160x1xf32>
    %21 = arith.subf %19, %20 : vector<160x1xf32>
    %c0_10 = arith.constant 0 : index
    %c0_11 = arith.constant 0 : index
    %22 = vector.load %arg4[%c0_10, %c0_11] : memref<160x1xf32, #tpu.memory_space<vmem>>, vector<160x1xf32>
    %cst_12 = arith.constant 9.99999974E-6 : f32
    %23 = vector.broadcast %cst_12 : f32 to vector<160x1xf32>
    %24 = arith.addf %21, %23 : vector<160x1xf32>
    %25 = math.rsqrt %24 : vector<160x1xf32>
    %26 = arith.mulf %22, %25 : vector<160x1xf32>
    %c0_13 = arith.constant 0 : index
    %c0_14 = arith.constant 0 : index
    %27 = vector.load %arg5[%c0_13, %c0_14] : memref<160x1xf32, #tpu.memory_space<vmem>>, vector<160x1xf32>
    %28 = arith.mulf %26, %17 : vector<160x1xf32>
    %29 = arith.subf %27, %28 : vector<160x1xf32>
    %c0_15 = arith.constant 0 : index
    %c0_16 = arith.constant 0 : index
    %30 = vector.load %arg6[%c0_15, %c0_16] : memref<160x256xf32, #tpu.memory_space<vmem>>, vector<160x256xf32>
    %31 = vector.broadcast %26 : vector<160x1xf32> to vector<160x256xf32>
    %32 = arith.mulf %31, %10 : vector<160x256xf32>
    %33 = arith.addf %30, %32 : vector<160x256xf32>
    %34 = vector.broadcast %29 : vector<160x1xf32> to vector<160x256xf32>
    %35 = arith.addf %33, %34 : vector<160x256xf32>
    %c0_17 = arith.constant 0 : index
    %c0_18 = arith.constant 0 : index
    %36 = vector.load %arg7[%c0_17, %c0_18] : memref<160x256xf32, #tpu.memory_space<vmem>>, vector<160x256xf32>
    tpu.vector_store %arg7[%c0_17, %c0_18], %35 {strides = array<i32>} : memref<160x256xf32, #tpu.memory_space<vmem>>, vector<160x256xf32>,
    return
  }
  func.func @transform_0(%arg0: i32) -> (i32, i32) {
    %c0_i32 = arith.constant 0 : i32
    %c0_i32_0 = arith.constant 0 : i32
    %c0_i32_1 = arith.constant 0 : i32
    return %c0_i32, %c0_i32_0 : i32, i32
  }
  func.func @transform_1(%arg0: i32) -> (i32, i32) {
    %c0_i32 = arith.constant 0 : i32
    %c0_i32_0 = arith.constant 0 : i32
    %c0_i32_1 = arith.constant 0 : i32
    return %c0_i32, %c0_i32_0 : i32, i32
  }
  func.func @transform_2(%arg0: i32) -> (i32, i32) {
    %c0_i32 = arith.constant 0 : i32
    %c0_i32_0 = arith.constant 0 : i32
    return %arg0, %c0_i32 : i32, i32
  }
  func.func @transform_3(%arg0: i32) -> (i32, i32) {
    %c0_i32 = arith.constant 0 : i32
    %c0_i32_0 = arith.constant 0 : i32
    return %arg0, %c0_i32 : i32, i32
  }
  func.func @transform_4(%arg0: i32) -> (i32, i32) {
    %c0_i32 = arith.constant 0 : i32
    %c0_i32_0 = arith.constant 0 : i32
    return %arg0, %c0_i32 : i32, i32
  }
  func.func @transform_5(%arg0: i32) -> (i32, i32) {
    %c0_i32 = arith.constant 0 : i32
    %c0_i32_0 = arith.constant 0 : i32
    return %arg0, %c0_i32 : i32, i32
  }
  func.func @transform_6(%arg0: i32) -> (i32, i32) {
    %c0_i32 = arith.constant 0 : i32
    %c0_i32_0 = arith.constant 0 : i32
    return %arg0, %c0_i32 : i32, i32
  }
}

</mosaic_0001>

<llo_original>
// kernel: fused_forward.1
$region0: #{fused_forward.1}
  #allocation0 [shape = 'u32[]', space=smem, size = 0x4, offset = 0x4, fixed_abs, tag = 'smem constant byte address 0x4 - core index']
  #allocation1 [shape = 'u32[144,128]{1,0:T(1,128)}', space=vmem, size = 0x12000, scoped, tag = 'internal scratch']
  %s0 = inlined_call_operand.vmem [shape: f32[320,1], index: 0, kind: input, shape index: {}]
  %s1 = inlined_call_operand.vmem [shape: f32[320,256], index: 1, kind: input, shape index: {}]
  %s2 = inlined_call_operand.vmem [shape: f32[320,320], index: 2, kind: input, shape index: {}]
  %s3 = inlined_call_operand.vmem [shape: f32[320,1], index: 3, kind: input, shape index: {}]
  %s4 = inlined_call_operand.vmem [shape: f32[320,1], index: 4, kind: input, shape index: {}]
  %s5 = inlined_call_operand.vmem [shape: f32[320,256], index: 5, kind: input, shape index: {}, may-alias: {5,6}]
  %s6 = inlined_call_operand.vmem [shape: f32[320,256], index: 6, kind: output, shape index: {}, may-alias: {5,6}]
  %s7 = sld [smem:[#allocation0]]
  $region57: #{fused_forward.1} parent=0
    _
  %s9 = ssub.s32 1, %s7
  %s10 = scalar_select 0, %s9, %s7
  loop: start=0, step=1, limit=4
  $region2: #{fused_forward.1} parent=0 // loop_pre_header
    _
  $region3: #{fused_forward.1} parent=0 // loop_header
    %s12 = sphi 0, %s16
    %p13 = scmp.ge.s32.totalorder %s12, 4
    %s20 = sphi 0, %s20
    %s22 = sphi 0, %s20
    %s23 = sphi 0, %s22
    %s37 = sphi 0, %s23
    %s41 = sphi 0, %s41
    %s43 = sphi 0, %s41
    %s44 = sphi 0, %s43
    %s58 = sphi 0, %s44
    %s64 = sphi 0, %s66
    %s67 = sphi 0, %s64
    %s68 = sphi 0, %s67
    %s84 = sphi 0, %s68
    %s90 = sphi 0, %s92
    %s93 = sphi 0, %s90
    %s94 = sphi 0, %s93
    %s110 = sphi 0, %s94
    %s116 = sphi 0, %s118
    %s119 = sphi 0, %s116
    %s120 = sphi 0, %s119
    %s136 = sphi 0, %s120
    %s142 = sphi 0, %s144
    %s145 = sphi 0, %s142
    %s146 = sphi 0, %s145
    %s162 = sphi 0, %s146
    %s168 = sphi 0, %s170
    %s171 = sphi 0, %s168
    %s172 = sphi 0, %s171
    %s188 = sphi 0, %s172
  $region4: #{fused_forward.1} parent=0 // loop_header_branch
    %15 = sbr.rel (%p13) target = $region8
  $region5: #{fused_forward.1} parent=0 // loop_body
    %s17 = ssub.s32 %s12, 1
    %s18 = ssub.s32 %s12, 2
    %s19 = sadd.s32 %s12, 1
    %s21 = sadd.s32 %s20, 1
    %p24 = scmp.eq.s32.totalorder %s12, 1
    %p25 = scmp.ne.s32.totalorder %s20, %s22
    %p26 = scmp.eq.s32.totalorder %s12, 0
    %p27 = por %p25, %p26
    %p28 = scmp.ne.s32.totalorder %s20, %s22
    %p29 = scmp.eq.s32.totalorder %s17, 1
    %p30 = por %p28, %p29
    %p31 = scmp.ne.s32.totalorder %s22, %s23
    %p32 = scmp.eq.s32.totalorder %s17, 0
    %p33 = por %p31, %p32
    %p34 = scmp.ne.s32.totalorder %s22, %s23
    %p35 = scmp.eq.s32.totalorder %s18, 1
    %p36 = por %p34, %p35
    %p38 = scmp.ne.s32.totalorder %s23, %s37
    %p39 = scmp.eq.s32.totalorder %s18, 0
    %p40 = por %p38, %p39
    %s42 = sadd.s32 %s41, 1
    %p45 = scmp.eq.s32.totalorder %s12, 1
    %p46 = scmp.ne.s32.totalorder %s41, %s43
    %p47 = scmp.eq.s32.totalorder %s12, 0
    %p48 = por %p46, %p47
    %p49 = scmp.ne.s32.totalorder %s41, %s43
    %p50 = scmp.eq.s32.totalorder %s17, 1
    %p51 = por %p49, %p50
    %p52 = scmp.ne.s32.totalorder %s43, %s44
    %p53 = scmp.eq.s32.totalorder %s17, 0
    %p54 = por %p52, %p53
    %p55 = scmp.ne.s32.totalorder %s43, %s44
    %p56 = scmp.eq.s32.totalorder %s18, 1
    %p57 = por %p55, %p56
    %p59 = scmp.ne.s32.totalorder %s44, %s58
    %p60 = scmp.eq.s32.totalorder %s18, 0
    %p61 = por %p59, %p60
    %s62 = ssub.s32 %s12, %s19
    %p63 = scmp.eq.s32.totalorder %s62, 0
    %s65 = sadd.s32 %s64, 1
    %s66 = scalar_select %p63, %s64, %s65
    %p69 = pneg %p63
    %p70 = scmp.eq.s32.totalorder %s12, 1
    %p71 = por %p69, %p70
    %p72 = scmp.ne.s32.totalorder %s64, %s67
    %p73 = scmp.eq.s32.totalorder %s12, 0
    %p74 = por %p72, %p73
    %p75 = scmp.ne.s32.totalorder %s64, %s67
    %p76 = scmp.eq.s32.totalorder %s17, 1
    %p77 = por %p75, %p76
    %p78 = scmp.ne.s32.totalorder %s67, %s68
    %p79 = scmp.eq.s32.totalorder %s17, 0
    %p80 = por %p78, %p79
    %p81 = scmp.ne.s32.totalorder %s67, %s68
    %p82 = scmp.eq.s32.totalorder %s18, 1
    %p83 = por %p81, %p82
    %p85 = scmp.ne.s32.totalorder %s68, %s84
    %p86 = scmp.eq.s32.totalorder %s18, 0
    %p87 = por %p85, %p86
    %s88 = ssub.s32 %s12, %s19
    %p89 = scmp.eq.s32.totalorder %s88, 0
    %s91 = sadd.s32 %s90, 1
    %s92 = scalar_select %p89, %s90, %s91
    %p95 = pneg %p89
    %p96 = scmp.eq.s32.totalorder %s12, 1
    %p97 = por %p95, %p96
    %p98 = scmp.ne.s32.totalorder %s90, %s93
    %p99 = scmp.eq.s32.totalorder %s12, 0
    %p100 = por %p98, %p99
    %p101 = scmp.ne.s32.totalorder %s90, %s93
    %p102 = scmp.eq.s32.totalorder %s17, 1
    %p103 = por %p101, %p102
    %p104 = scmp.ne.s32.totalorder %s93, %s94
    %p105 = scmp.eq.s32.totalorder %s17, 0
    %p106 = por %p104, %p105
    %p107 = scmp.ne.s32.totalorder %s93, %s94
    %p108 = scmp.eq.s32.totalorder %s18, 1
    %p109 = por %p107, %p108
    %p111 = scmp.ne.s32.totalorder %s94, %s110
    %p112 = scmp.eq.s32.totalorder %s18, 0
    %p113 = por %p111, %p112
    %s114 = ssub.s32 %s12, %s19
    %p115 = scmp.eq.s32.totalorder %s114, 0
    %s117 = sadd.s32 %s116, 1
    %s118 = scalar_select %p115, %s116, %s117
    %p121 = pneg %p115
    %p122 = scmp.eq.s32.totalorder %s12, 1
    %p123 = por %p121, %p122
    %p124 = scmp.ne.s32.totalorder %s116, %s119
    %p125 = scmp.eq.s32.totalorder %s12, 0
    %p126 = por %p124, %p125
    %p127 = scmp.ne.s32.totalorder %s116, %s119
    %p128 = scmp.eq.s32.totalorder %s17, 1
    %p129 = por %p127, %p128
    %p130 = scmp.ne.s32.totalorder %s119, %s120
    %p131 = scmp.eq.s32.totalorder %s17, 0
    %p132 = por %p130, %p131
    %p133 = scmp.ne.s32.totalorder %s119, %s120
    %p134 = scmp.eq.s32.totalorder %s18, 1
    %p135 = por %p133, %p134
    %p137 = scmp.ne.s32.totalorder %s120, %s136
    %p138 = scmp.eq.s32.totalorder %s18, 0
    %p139 = por %p137, %p138
    %s140 = ssub.s32 %s12, %s19
    %p141 = scmp.eq.s32.totalorder %s140, 0
    %s143 = sadd.s32 %s142, 1
    %s144 = scalar_select %p141, %s142, %s143
    %p147 = pneg %p141
    %p148 = scmp.eq.s32.totalorder %s12, 1
    %p149 = por %p147, %p148
    %p150 = scmp.ne.s32.totalorder %s142, %s145
    %p151 = scmp.eq.s32.totalorder %s12, 0
    %p152 = por %p150, %p151
    %p153 = scmp.ne.s32.totalorder %s142, %s145
    %p154 = scmp.eq.s32.totalorder %s17, 1
    %p155 = por %p153, %p154
    %p156 = scmp.ne.s32.totalorder %s145, %s146
    %p157 = scmp.eq.s32.totalorder %s17, 0
    %p158 = por %p156, %p157
    %p159 = scmp.ne.s32.totalorder %s145, %s146
    %p160 = scmp.eq.s32.totalorder %s18, 1
    %p161 = por %p159, %p160
    %p163 = scmp.ne.s32.totalorder %s146, %s162
    %p164 = scmp.eq.s32.totalorder %s18, 0
    %p165 = por %p163, %p164
    %s166 = ssub.s32 %s12, %s19
    %p167 = scmp.eq.s32.totalorder %s166, 0
    %s169 = sadd.s32 %s168, 1
    %s170 = scalar_select %p167, %s168, %s169
    %p173 = pneg %p167
    %p174 = scmp.eq.s32.totalorder %s12, 1
    %p175 = por %p173, %p174
    %p176 = scmp.ne.s32.totalorder %s168, %s171
    %p177 = scmp.eq.s32.totalorder %s12, 0
    %p178 = por %p176, %p177
    %p179 = scmp.ne.s32.totalorder %s168, %s171
    %p180 = scmp.eq.s32.totalorder %s17, 1
    %p181 = por %p179, %p180
    %p182 = scmp.ne.s32.totalorder %s171, %s172
    %p183 = scmp.eq.s32.totalorder %s17, 0
    %p184 = por %p182, %p183
    %p185 = scmp.ne.s32.totalorder %s171, %s172
    %p186 = scmp.eq.s32.totalorder %s18, 1
    %p187 = por %p185, %p186
    %p189 = scmp.ne.s32.totalorder %s172, %s188
    %p190 = scmp.eq.s32.totalorder %s18, 0
    %p191 = por %p189, %p190
    %p192 = scmp.le.s32.totalorder 1, %s12
    %p193 = scmp.lt.s32.totalorder %s12, 3
    %p194 = pnand %p192, %p193
    %p195 = pneg %p194
    // Predicated region
    $region9: #{fused_forward.1} parent=5 // pred_check
      _
    $region10: #{fused_forward.1} parent=5 // pred_check_branch
      %197 = sbr.rel (%p194) target = $region12
    $region11: #{fused_forward.1} parent=5 // pred_region
      %s198 = ssub.s32 %s12, 1
      // Predicated region
      $region13: #{fused_forward.1} parent=11 // pred_check
        %p199 = pneg %p33
      $region14: #{fused_forward.1} parent=11 // pred_check_branch
        %201 = sbr.rel (%p199) target = $region16
      $region15: #{fused_forward.1} parent=11 // pred_region
        _
      $region16: #{fused_forward.1} parent=11 // pred_fallthru
        _
      // Predicated region
      $region17: #{fused_forward.1} parent=11 // pred_check
        %p202 = pneg %p54
      $region18: #{fused_forward.1} parent=11 // pred_check_branch
        %204 = sbr.rel (%p202) target = $region20
      $region19: #{fused_forward.1} parent=11 // pred_region
        _
      $region20: #{fused_forward.1} parent=11 // pred_fallthru
        _
    $region12: #{fused_forward.1} parent=5 // pred_fallthru
      _
    %p205 = scmp.lt.s32.totalorder %s12, 2
    // Predicated region
    $region21: #{fused_forward.1} parent=5 // pred_check
      %p206 = pneg %p205
    $region22: #{fused_forward.1} parent=5 // pred_check_branch
      %208 = sbr.rel (%p206) target = $region24
    $region23: #{fused_forward.1} parent=5 // pred_region
      // Predicated region
      $region25: #{fused_forward.1} parent=23 // pred_check
        %p209 = pneg %p74
      $region26: #{fused_forward.1} parent=23 // pred_check_branch
        %211 = sbr.rel (%p209) target = $region28
      $region27: #{fused_forward.1} parent=23 // pred_region
        %s212 = smul.u32 20, %s12
        %p213 = scmp.lt.s32.totalorder %s212, 39
        %s214 = scalar_select %p213, %s212, 39
        %s215 = smul.addr %s214, 3
        %s216 = smul.addr %s215, 8
        %s217 = scalar_lea.vmem %s2, %s216
        %s218 = smul.u32 20, %s12
      $region28: #{fused_forward.1} parent=23 // pred_fallthru
        _
      // Predicated region
      $region29: #{fused_forward.1} parent=23 // pred_check
        %p219 = pneg %p100
      $region30: #{fused_forward.1} parent=23 // pred_check_branch
        %221 = sbr.rel (%p219) target = $region32
      $region31: #{fused_forward.1} parent=23 // pred_region
        %s222 = smul.u32 20, %s12
        %p223 = scmp.lt.s32.totalorder %s222, 39
        %s224 = scalar_select %p223, %s222, 39
        %s225 = smul.addr %s224, 8
        %s226 = scalar_lea.vmem %s3, %s225
        %s227 = smul.u32 20, %s12
      $region32: #{fused_forward.1} parent=23 // pred_fallthru
        _
      // Predicated region
      $region33: #{fused_forward.1} parent=23 // pred_check
        %p228 = pneg %p126
      $region34: #{fused_forward.1} parent=23 // pred_check_branch
        %230 = sbr.rel (%p228) target = $region36
      $region35: #{fused_forward.1} parent=23 // pred_region
        %s231 = smul.u32 20, %s12
        %p232 = scmp.lt.s32.totalorder %s231, 39
        %s233 = scalar_select %p232, %s231, 39
        %s234 = smul.addr %s233, 8
        %s235 = scalar_lea.vmem %s4, %s234
        %s236 = smul.u32 20, %s12
      $region36: #{fused_forward.1} parent=23 // pred_fallthru
        _
      // Predicated region
      $region37: #{fused_forward.1} parent=23 // pred_check
        %p237 = pneg %p152
      $region38: #{fused_forward.1} parent=23 // pred_check_branch
        %239 = sbr.rel (%p237) target = $region40
      $region39: #{fused_forward.1} parent=23 // pred_region
        %s240 = smul.u32 20, %s12
        %p241 = scmp.lt.s32.totalorder %s240, 39
        %s242 = scalar_select %p241, %s240, 39
        %s243 = smul.addr %s242, 2
        %s244 = smul.addr %s243, 8
        %s245 = scalar_lea.vmem %s5, %s244
        %s246 = smul.u32 20, %s12
      $region40: #{fused_forward.1} parent=23 // pred_fallthru
        _
    $region24: #{fused_forward.1} parent=5 // pred_fallthru
      _
    %p247 = scmp.le.s32.totalorder 1, %s12
    %p248 = scmp.lt.s32.totalorder %s12, 3
    %p249 = pnand %p247, %p248
    %p250 = pneg %p249
    // Predicated region
    $region41: #{fused_forward.1} parent=5 // pred_check
      _
    $region42: #{fused_forward.1} parent=5 // pred_check_branch
      %252 = sbr.rel (%p249) target = $region44
    $region43: #{fused_forward.1} parent=5 // pred_region
      %s253 = ssub.s32 %s12, 1
      %p254 = pneg %p33
      %p255 = pneg %p30
      %p256 = pneg %p54
      %p257 = pneg %p51
      %s258 = smul.u32 20, %s17
      %p259 = scmp.lt.s32.totalorder %s258, 39
      %s260 = scalar_select %p259, %s258, 39
      %s261 = smul.addr %s260, 3
      %s262 = smul.addr %s261, 8
      %s263 = scalar_lea.vmem %s2, %s262
      %p264 = pneg %p80
      %p265 = pneg %p77
      %s266 = smul.u32 20, %s17
      %p267 = scmp.lt.s32.totalorder %s266, 39
      %s268 = scalar_select %p267, %s266, 39
      %s269 = smul.addr %s268, 8
      %s270 = scalar_lea.vmem %s3, %s269
      %p271 = pneg %p106
      %p272 = pneg %p103
      %s273 = smul.u32 20, %s17
      %p274 = scmp.lt.s32.totalorder %s273, 39
      %s275 = scalar_select %p274, %s273, 39
      %s276 = smul.addr %s275, 8
      %s277 = scalar_lea.vmem %s4, %s276
      %p278 = pneg %p132
      %p279 = pneg %p129
      %s280 = smul.u32 20, %s17
      %p281 = scmp.lt.s32.totalorder %s280, 39
      %s282 = scalar_select %p281, %s280, 39
      %s283 = smul.addr %s282, 2
      %s284 = smul.addr %s283, 8
      %s285 = scalar_lea.vmem %s5, %s284
      %p286 = pneg %p158
      %p287 = pneg %p155
      %p288 = pneg %p184
      %p289 = pneg %p181
      %s290 = smul.u32 20, %s17
      %p291 = scmp.lt.s32.totalorder %s290, 39
      %s292 = scalar_select %p291, %s290, 39
      %s293 = smul.addr %s292, 2
      %s294 = smul.addr %s293, 8
      %s295 = scalar_lea.vmem %s6, %s294
      %s296 = smul.u32 20, %s17
      %p297 = scmp.lt.s32.totalorder %s296, 39
      %s298 = scalar_select %p297, %s296, 39
      %s299 = smul.addr %s298, 3
      %s300 = smul.addr %s299, 8
      %s301 = scalar_lea.vmem %s2, %s300
      %s302 = smul.u32 20, %s17
      %s303 = smul.u32 20, %s17
      %p304 = scmp.lt.s32.totalorder %s303, 39
      %s305 = scalar_select %p304, %s303, 39
      %s306 = smul.addr %s305, 8
      %s307 = scalar_lea.vmem %s3, %s306
      %s308 = smul.u32 20, %s17
      %s309 = smul.u32 20, %s17
      %p310 = scmp.lt.s32.totalorder %s309, 39
      %s311 = scalar_select %p310, %s309, 39
      %s312 = smul.addr %s311, 8
      %s313 = scalar_lea.vmem %s4, %s312
      %s314 = smul.u32 20, %s17
      %s315 = smul.u32 20, %s17
      %p316 = scmp.lt.s32.totalorder %s315, 39
      %s317 = scalar_select %p316, %s315, 39
      %s318 = smul.addr %s317, 2
      %s319 = smul.addr %s318, 8
      %s320 = scalar_lea.vmem %s5, %s319
      %s321 = smul.u32 20, %s17
      %s322 = smul.u32 20, %s17
      %p323 = scmp.lt.s32.totalorder %s322, 39
      %s324 = scalar_select %p323, %s322, 39
      %s325 = smul.addr %s324, 2
      %s326 = smul.addr %s325, 8
      %s327 = scalar_lea.vmem %s6, %s326
      %s328 = smul.u32 20, %s17
      %v329 = vld [vmem:[%s0] sm:$0xff]
      %v330 = vld [vmem:[%s0 + $0x8] sm:$0xff]
      %v331 = vld [vmem:[%s0 + $0x10] sm:$0xff]
      %v332 = vld [vmem:[%s0 + $0x18] sm:$0xff]
      %v333 = vld [vmem:[%s0 + $0x20] sm:$0xff]
      %v334 = vld [vmem:[%s0 + $0x28] sm:$0xff]
      %v335 = vld [vmem:[%s0 + $0x30] sm:$0xff]
      %v336 = vld [vmem:[%s0 + $0x38] sm:$0xff]
      %v337 = vld [vmem:[%s0 + $0x40] sm:$0xff]
      %v338 = vld [vmem:[%s0 + $0x48] sm:$0xff]
      %v339 = vld [vmem:[%s0 + $0x50] sm:$0xff]
      %v340 = vld [vmem:[%s0 + $0x58] sm:$0xff]
      %v341 = vld [vmem:[%s0 + $0x60] sm:$0xff]
      %v342 = vld [vmem:[%s0 + $0x68] sm:$0xff]
      %v343 = vld [vmem:[%s0 + $0x70] sm:$0xff]
      %v344 = vld [vmem:[%s0 + $0x78] sm:$0xff]
      %v345 = vld [vmem:[%s0 + $0x80] sm:$0xff]
      %v346 = vld [vmem:[%s0 + $0x88] sm:$0xff]
      %v347 = vld [vmem:[%s0 + $0x90] sm:$0xff]
      %v348 = vld [vmem:[%s0 + $0x98] sm:$0xff]
      %v349 = vld [vmem:[%s0 + $0xa0] sm:$0xff]
      %v350 = vld [vmem:[%s0 + $0xa8] sm:$0xff]
      %v351 = vld [vmem:[%s0 + $0xb0] sm:$0xff]
      %v352 = vld [vmem:[%s0 + $0xb8] sm:$0xff]
      %v353 = vld [vmem:[%s0 + $0xc0] sm:$0xff]
      %v354 = vld [vmem:[%s0 + $0xc8] sm:$0xff]
      %v355 = vld [vmem:[%s0 + $0xd0] sm:$0xff]
      %v356 = vld [vmem:[%s0 + $0xd8] sm:$0xff]
      %v357 = vld [vmem:[%s0 + $0xe0] sm:$0xff]
      %v358 = vld [vmem:[%s0 + $0xe8] sm:$0xff]
      %v359 = vld [vmem:[%s0 + $0xf0] sm:$0xff]
      %v360 = vld [vmem:[%s0 + $0xf8] sm:$0xff]
      %v361 = vld [vmem:[%s0 + $0x100] sm:$0xff]
      %v362 = vld [vmem:[%s0 + $0x108] sm:$0xff]
      %v363 = vld [vmem:[%s0 + $0x110] sm:$0xff]
      %v364 = vld [vmem:[%s0 + $0x118] sm:$0xff]
      %v365 = vld [vmem:[%s0 + $0x120] sm:$0xff]
      %v366 = vld [vmem:[%s0 + $0x128] sm:$0xff]
      %v367 = vld [vmem:[%s0 + $0x130] sm:$0xff]
      %v368 = vld [vmem:[%s0 + $0x138] sm:$0xff]
      %v369 = vxor.u32 %v329, 2147483648
      %v370 = vxor.u32 %v330, 2147483648
      %v371 = vxor.u32 %v331, 2147483648
      %v372 = vxor.u32 %v332, 2147483648
      %v373 = vxor.u32 %v333, 2147483648
      %v374 = vxor.u32 %v334, 2147483648
      %v375 = vxor.u32 %v335, 2147483648
      %v376 = vxor.u32 %v336, 2147483648
      %v377 = vxor.u32 %v337, 2147483648
      %v378 = vxor.u32 %v338, 2147483648
      %v379 = vxor.u32 %v339, 2147483648
      %v380 = vxor.u32 %v340, 2147483648
      %v381 = vxor.u32 %v341, 2147483648
      %v382 = vxor.u32 %v342, 2147483648
      %v383 = vxor.u32 %v343, 2147483648
      %v384 = vxor.u32 %v344, 2147483648
      %v385 = vxor.u32 %v345, 2147483648
      %v386 = vxor.u32 %v346, 2147483648
      %v387 = vxor.u32 %v347, 2147483648
      %v388 = vxor.u32 %v348, 2147483648
      %v389 = vxor.u32 %v349, 2147483648
      %v390 = vxor.u32 %v350, 2147483648
      %v391 = vxor.u32 %v351, 2147483648
      %v392 = vxor.u32 %v352, 2147483648
      %v393 = vxor.u32 %v353, 2147483648
      %v394 = vxor.u32 %v354, 2147483648
      %v395 = vxor.u32 %v355, 2147483648
      %v396 = vxor.u32 %v356, 2147483648
      %v397 = vxor.u32 %v357, 2147483648
      %v398 = vxor.u32 %v358, 2147483648
      %v399 = vxor.u32 %v359, 2147483648
      %v400 = vxor.u32 %v360, 2147483648
      %v401 = vxor.u32 %v361, 2147483648
      %v402 = vxor.u32 %v362, 2147483648
      %v403 = vxor.u32 %v363, 2147483648
      %v404 = vxor.u32 %v364, 2147483648
      %v405 = vxor.u32 %v365, 2147483648
      %v406 = vxor.u32 %v366, 2147483648
      %v407 = vxor.u32 %v367, 2147483648
      %v408 = vxor.u32 %v368, 2147483648
      %v409 = vmul.f32 %v369, 1.442695
      %v410 = vpow.pop %v409
      %v411 = vmul.f32 %v370, 1.442695
      %v412 = vpow.pop %v411
      %v413 = vmul.f32 %v371, 1.442695
      %v414 = vpow.pop %v413
      %v415 = vmul.f32 %v372, 1.442695
      %v416 = vpow.pop %v415
      %v417 = vmul.f32 %v373, 1.442695
      %v418 = vpow.pop %v417
      %v419 = vmul.f32 %v374, 1.442695
      %v420 = vpow.pop %v419
      %v421 = vmul.f32 %v375, 1.442695
      %v422 = vpow.pop %v421
      %v423 = vmul.f32 %v376, 1.442695
      %v424 = vpow.pop %v423
      %v425 = vmul.f32 %v377, 1.442695
      %v426 = vpow.pop %v425
      %v427 = vmul.f32 %v378, 1.442695
      %v428 = vpow.pop %v427
      %v429 = vmul.f32 %v379, 1.442695
      %v430 = vpow.pop %v429
      %v431 = vmul.f32 %v380, 1.442695
      %v432 = vpow.pop %v431
      %v433 = vmul.f32 %v381, 1.442695
      %v434 = vpow.pop %v433
      %v435 = vmul.f32 %v382, 1.442695
      %v436 = vpow.pop %v435
      %v437 = vmul.f32 %v383, 1.442695
      %v438 = vpow.pop %v437
      %v439 = vmul.f32 %v384, 1.442695
      %v440 = vpow.pop %v439
      %v441 = vmul.f32 %v385, 1.442695
      %v442 = vpow.pop %v441
      %v443 = vmul.f32 %v386, 1.442695
      %v444 = vpow.pop %v443
      %v445 = vmul.f32 %v387, 1.442695
      %v446 = vpow.pop %v445
      %v447 = vmul.f32 %v388, 1.442695
      %v448 = vpow.pop %v447
      %v449 = vmul.f32 %v389, 1.442695
      %v450 = vpow.pop %v449
      %v451 = vmul.f32 %v390, 1.442695
      %v452 = vpow.pop %v451
      %v453 = vmul.f32 %v391, 1.442695
      %v454 = vpow.pop %v453
      %v455 = vmul.f32 %v392, 1.442695
      %v456 = vpow.pop %v455
      %v457 = vmul.f32 %v393, 1.442695
      %v458 = vpow.pop %v457
      %v459 = vmul.f32 %v394, 1.442695
      %v460 = vpow.pop %v459
      %v461 = vmul.f32 %v395, 1.442695
      %v462 = vpow.pop %v461
      %v463 = vmul.f32 %v396, 1.442695
      %v464 = vpow.pop %v463
      %v465 = vmul.f32 %v397, 1.442695
      %v466 = vpow.pop %v465
      %v467 = vmul.f32 %v398, 1.442695
      %v468 = vpow.pop %v467
      %v469 = vmul.f32 %v399, 1.442695
      %v470 = vpow.pop %v469
      %v471 = vmul.f32 %v400, 1.442695
      %v472 = vpow.pop %v471
      %v473 = vmul.f32 %v401, 1.442695
      %v474 = vpow.pop %v473
      %v475 = vmul.f32 %v402, 1.442695
      %v476 = vpow.pop %v475
      %v477 = vmul.f32 %v403, 1.442695
      %v478 = vpow.pop %v477
      %v479 = vmul.f32 %v404, 1.442695
      %v480 = vpow.pop %v479
      %v481 = vmul.f32 %v405, 1.442695
      %v482 = vpow.pop %v481
      %v483 = vmul.f32 %v406, 1.442695
      %v484 = vpow.pop %v483
      %v485 = vmul.f32 %v407, 1.442695
      %v486 = vpow.pop %v485
      %v487 = vmul.f32 %v408, 1.442695
      %v488 = vpow.pop %v487
      %v489 = vadd.f32 %v410, 1.0
      %v490 = vadd.f32 %v412, 1.0
      %v491 = vadd.f32 %v414, 1.0
      %v492 = vadd.f32 %v416, 1.0
      %v493 = vadd.f32 %v418, 1.0
      %v494 = vadd.f32 %v420, 1.0
      %v495 = vadd.f32 %v422, 1.0
      %v496 = vadd.f32 %v424, 1.0
      %v497 = vadd.f32 %v426, 1.0
      %v498 = vadd.f32 %v428, 1.0
      %v499 = vadd.f32 %v430, 1.0
      %v500 = vadd.f32 %v432, 1.0
      %v501 = vadd.f32 %v434, 1.0
      %v502 = vadd.f32 %v436, 1.0
      %v503 = vadd.f32 %v438, 1.0
      %v504 = vadd.f32 %v440, 1.0
      %v505 = vadd.f32 %v442, 1.0
      %v506 = vadd.f32 %v444, 1.0
      %v507 = vadd.f32 %v446, 1.0
      %v508 = vadd.f32 %v448, 1.0
      %v509 = vadd.f32 %v450, 1.0
      %v510 = vadd.f32 %v452, 1.0
      %v511 = vadd.f32 %v454, 1.0
      %v512 = vadd.f32 %v456, 1.0
      %v513 = vadd.f32 %v458, 1.0
      %v514 = vadd.f32 %v460, 1.0
      %v515 = vadd.f32 %v462, 1.0
      %v516 = vadd.f32 %v464, 1.0
      %v517 = vadd.f32 %v466, 1.0
      %v518 = vadd.f32 %v468, 1.0
      %v519 = vadd.f32 %v470, 1.0
      %v520 = vadd.f32 %v472, 1.0
      %v521 = vadd.f32 %v474, 1.0
      %v522 = vadd.f32 %v476, 1.0
      %v523 = vadd.f32 %v478, 1.0
      %v524 = vadd.f32 %v480, 1.0
      %v525 = vadd.f32 %v482, 1.0
      %v526 = vadd.f32 %v484, 1.0
      %v527 = vadd.f32 %v486, 1.0
      %v528 = vadd.f32 %v488, 1.0
      %v529 = vrcp.pop %v489
      %v530 = vmul.f32 1.0, %v529
      %v531 = vrcp.pop %v490
      %v532 = vmul.f32 1.0, %v531
      %v533 = vrcp.pop %v491
      %v534 = vmul.f32 1.0, %v533
      %v535 = vrcp.pop %v492
      %v536 = vmul.f32 1.0, %v535
      %v537 = vrcp.pop %v493
      %v538 = vmul.f32 1.0, %v537
      %v539 = vrcp.pop %v494
      %v540 = vmul.f32 1.0, %v539
      %v541 = vrcp.pop %v495
      %v542 = vmul.f32 1.0, %v541
      %v543 = vrcp.pop %v496
      %v544 = vmul.f32 1.0, %v543
      %v545 = vrcp.pop %v497
      %v546 = vmul.f32 1.0, %v545
      %v547 = vrcp.pop %v498
      %v548 = vmul.f32 1.0, %v547
      %v549 = vrcp.pop %v499
      %v550 = vmul.f32 1.0, %v549
      %v551 = vrcp.pop %v500
      %v552 = vmul.f32 1.0, %v551
      %v553 = vrcp.pop %v501
      %v554 = vmul.f32 1.0, %v553
      %v555 = vrcp.pop %v502
      %v556 = vmul.f32 1.0, %v555
      %v557 = vrcp.pop %v503
      %v558 = vmul.f32 1.0, %v557
      %v559 = vrcp.pop %v504
      %v560 = vmul.f32 1.0, %v559
      %v561 = vrcp.pop %v505
      %v562 = vmul.f32 1.0, %v561
      %v563 = vrcp.pop %v506
      %v564 = vmul.f32 1.0, %v563
      %v565 = vrcp.pop %v507
      %v566 = vmul.f32 1.0, %v565
      %v567 = vrcp.pop %v508
      %v568 = vmul.f32 1.0, %v567
      %v569 = vrcp.pop %v509
      %v570 = vmul.f32 1.0, %v569
      %v571 = vrcp.pop %v510
      %v572 = vmul.f32 1.0, %v571
      %v573 = vrcp.pop %v511
      %v574 = vmul.f32 1.0, %v573
      %v575 = vrcp.pop %v512
      %v576 = vmul.f32 1.0, %v575
      %v577 = vrcp.pop %v513
      %v578 = vmul.f32 1.0, %v577
      %v579 = vrcp.pop %v514
      %v580 = vmul.f32 1.0, %v579
      %v581 = vrcp.pop %v515
      %v582 = vmul.f32 1.0, %v581
      %v583 = vrcp.pop %v516
      %v584 = vmul.f32 1.0, %v583
      %v585 = vrcp.pop %v517
      %v586 = vmul.f32 1.0, %v585
      %v587 = vrcp.pop %v518
      %v588 = vmul.f32 1.0, %v587
      %v589 = vrcp.pop %v519
      %v590 = vmul.f32 1.0, %v589
      %v591 = vrcp.pop %v520
      %v592 = vmul.f32 1.0, %v591
      %v593 = vrcp.pop %v521
      %v594 = vmul.f32 1.0, %v593
      %v595 = vrcp.pop %v522
      %v596 = vmul.f32 1.0, %v595
      %v597 = vrcp.pop %v523
      %v598 = vmul.f32 1.0, %v597
      %v599 = vrcp.pop %v524
      %v600 = vmul.f32 1.0, %v599
      %v601 = vrcp.pop %v525
      %v602 = vmul.f32 1.0, %v601
      %v603 = vrcp.pop %v526
      %v604 = vmul.f32 1.0, %v603
      %v605 = vrcp.pop %v527
      %v606 = vmul.f32 1.0, %v605
      %v607 = vrcp.pop %v528
      %v608 = vmul.f32 1.0, %v607
      %v609 = vld [vmem:[%s1] sm:$0xff]
      %v610 = vld [vmem:[%s1 + $0x8] sm:$0xff]
      %v611 = vld [vmem:[%s1 + $0x10] sm:$0xff]
      %v612 = vld [vmem:[%s1 + $0x18] sm:$0xff]
      %v613 = vld [vmem:[%s1 + $0x20] sm:$0xff]
      %v614 = vld [vmem:[%s1 + $0x28] sm:$0xff]
      %v615 = vld [vmem:[%s1 + $0x30] sm:$0xff]
      %v616 = vld [vmem:[%s1 + $0x38] sm:$0xff]
      %v617 = vld [vmem:[%s1 + $0x40] sm:$0xff]
      %v618 = vld [vmem:[%s1 + $0x48] sm:$0xff]
      %v619 = vld [vmem:[%s1 + $0x50] sm:$0xff]
      %v620 = vld [vmem:[%s1 + $0x58] sm:$0xff]
      %v621 = vld [vmem:[%s1 + $0x60] sm:$0xff]
      %v622 = vld [vmem:[%s1 + $0x68] sm:$0xff]
      %v623 = vld [vmem:[%s1 + $0x70] sm:$0xff]
      %v624 = vld [vmem:[%s1 + $0x78] sm:$0xff]
      %v625 = vld [vmem:[%s1 + $0x80] sm:$0xff]
      %v626 = vld [vmem:[%s1 + $0x88] sm:$0xff]
      %v627 = vld [vmem:[%s1 + $0x90] sm:$0xff]
      %v628 = vld [vmem:[%s1 + $0x98] sm:$0xff]
      %v629 = vld [vmem:[%s1 + $0xa0] sm:$0xff]
      %v630 = vld [vmem:[%s1 + $0xa8] sm:$0xff]
      %v631 = vld [vmem:[%s1 + $0xb0] sm:$0xff]
      %v632 = vld [vmem:[%s1 + $0xb8] sm:$0xff]
      %v633 = vld [vmem:[%s1 + $0xc0] sm:$0xff]
      %v634 = vld [vmem:[%s1 + $0xc8] sm:$0xff]
      %v635 = vld [vmem:[%s1 + $0xd0] sm:$0xff]
      %v636 = vld [vmem:[%s1 + $0xd8] sm:$0xff]
      %v637 = vld [vmem:[%s1 + $0xe0] sm:$0xff]
      %v638 = vld [vmem:[%s1 + $0xe8] sm:$0xff]
      %v639 = vld [vmem:[%s1 + $0xf0] sm:$0xff]
      %v640 = vld [vmem:[%s1 + $0xf8] sm:$0xff]
      %v641 = vld [vmem:[%s1 + $0x100] sm:$0xff]
      %v642 = vld [vmem:[%s1 + $0x108] sm:$0xff]
      %v643 = vld [vmem:[%s1 + $0x110] sm:$0xff]
      %v644 = vld [vmem:[%s1 + $0x118] sm:$0xff]
      %v645 = vld [vmem:[%s1 + $0x120] sm:$0xff]
      %v646 = vld [vmem:[%s1 + $0x128] sm:$0xff]
      %v647 = vld [vmem:[%s1 + $0x130] sm:$0xff]
      %v648 = vld [vmem:[%s1 + $0x138] sm:$0xff]
      %v649 = vld [vmem:[%s1 + $0x140] sm:$0xff]
      %v650 = vld [vmem:[%s1 + $0x148] sm:$0xff]
      %v651 = vld [vmem:[%s1 + $0x150] sm:$0xff]
      %v652 = vld [vmem:[%s1 + $0x158] sm:$0xff]
      %v653 = vld [vmem:[%s1 + $0x160] sm:$0xff]
      %v654 = vld [vmem:[%s1 + $0x168] sm:$0xff]
      %v655 = vld [vmem:[%s1 + $0x170] sm:$0xff]
      %v656 = vld [vmem:[%s1 + $0x178] sm:$0xff]
      %v657 = vld [vmem:[%s1 + $0x180] sm:$0xff]
      %v658 = vld [vmem:[%s1 + $0x188] sm:$0xff]
      %v659 = vld [vmem:[%s1 + $0x190] sm:$0xff]
      %v660 = vld [vmem:[%s1 + $0x198] sm:$0xff]
      %v661 = vld [vmem:[%s1 + $0x1a0] sm:$0xff]
      %v662 = vld [vmem:[%s1 + $0x1a8] sm:$0xff]
      %v663 = vld [vmem:[%s1 + $0x1b0] sm:$0xff]
      %v664 = vld [vmem:[%s1 + $0x1b8] sm:$0xff]
      %v665 = vld [vmem:[%s1 + $0x1c0] sm:$0xff]
      %v666 = vld [vmem:[%s1 + $0x1c8] sm:$0xff]
      %v667 = vld [vmem:[%s1 + $0x1d0] sm:$0xff]
      %v668 = vld [vmem:[%s1 + $0x1d8] sm:$0xff]
      %v669 = vld [vmem:[%s1 + $0x1e0] sm:$0xff]
      %v670 = vld [vmem:[%s1 + $0x1e8] sm:$0xff]
      %v671 = vld [vmem:[%s1 + $0x1f0] sm:$0xff]
      %v672 = vld [vmem:[%s1 + $0x1f8] sm:$0xff]
      %v673 = vld [vmem:[%s1 + $0x200] sm:$0xff]
      %v674 = vld [vmem:[%s1 + $0x208] sm:$0xff]
      %v675 = vld [vmem:[%s1 + $0x210] sm:$0xff]
      %v676 = vld [vmem:[%s1 + $0x218] sm:$0xff]
      %v677 = vld [vmem:[%s1 + $0x220] sm:$0xff]
      %v678 = vld [vmem:[%s1 + $0x228] sm:$0xff]
      %v679 = vld [vmem:[%s1 + $0x230] sm:$0xff]
      %v680 = vld [vmem:[%s1 + $0x238] sm:$0xff]
      %v681 = vld [vmem:[%s1 + $0x240] sm:$0xff]
      %v682 = vld [vmem:[%s1 + $0x248] sm:$0xff]
      %v683 = vld [vmem:[%s1 + $0x250] sm:$0xff]
      %v684 = vld [vmem:[%s1 + $0x258] sm:$0xff]
      %v685 = vld [vmem:[%s1 + $0x260] sm:$0xff]
      %v686 = vld [vmem:[%s1 + $0x268] sm:$0xff]
      %v687 = vld [vmem:[%s1 + $0x270] sm:$0xff]
      %v688 = vld [vmem:[%s1 + $0x278] sm:$0xff]
      %690 = vset.pattern.permute.xlu0 0
      %691 = vperm.xlu0 %690, %v530
      %v692 = vpop.permute.xlu0 %691
      %695 = vset.pattern.permute.xlu0 0
      %696 = vperm.xlu0 %695, %v532
      %v697 = vpop.permute.xlu0 %696
      %700 = vset.pattern.permute.xlu0 0
      %701 = vperm.xlu0 %700, %v534
      %v702 = vpop.permute.xlu0 %701
      %705 = vset.pattern.permute.xlu0 0
      %706 = vperm.xlu0 %705, %v536
      %v707 = vpop.permute.xlu0 %706
      %710 = vset.pattern.permute.xlu0 0
      %711 = vperm.xlu0 %710, %v538
      %v712 = vpop.permute.xlu0 %711
      %715 = vset.pattern.permute.xlu0 0
      %716 = vperm.xlu0 %715, %v540
      %v717 = vpop.permute.xlu0 %716
      %720 = vset.pattern.permute.xlu0 0
      %721 = vperm.xlu0 %720, %v542
      %v722 = vpop.permute.xlu0 %721
      %725 = vset.pattern.permute.xlu0 0
      %726 = vperm.xlu0 %725, %v544
      %v727 = vpop.permute.xlu0 %726
      %730 = vset.pattern.permute.xlu0 0
      %731 = vperm.xlu0 %730, %v546
      %v732 = vpop.permute.xlu0 %731
      %735 = vset.pattern.permute.xlu0 0
      %736 = vperm.xlu0 %735, %v548
      %v737 = vpop.permute.xlu0 %736
      %740 = vset.pattern.permute.xlu0 0
      %741 = vperm.xlu0 %740, %v550
      %v742 = vpop.permute.xlu0 %741
      %745 = vset.pattern.permute.xlu0 0
      %746 = vperm.xlu0 %745, %v552
      %v747 = vpop.permute.xlu0 %746
      %750 = vset.pattern.permute.xlu0 0
      %751 = vperm.xlu0 %750, %v554
      %v752 = vpop.permute.xlu0 %751
      %755 = vset.pattern.permute.xlu0 0
      %756 = vperm.xlu0 %755, %v556
      %v757 = vpop.permute.xlu0 %756
      %760 = vset.pattern.permute.xlu0 0
      %761 = vperm.xlu0 %760, %v558
      %v762 = vpop.permute.xlu0 %761
      %765 = vset.pattern.permute.xlu0 0
      %766 = vperm.xlu0 %765, %v560
      %v767 = vpop.permute.xlu0 %766
      %770 = vset.pattern.permute.xlu0 0
      %771 = vperm.xlu0 %770, %v562
      %v772 = vpop.permute.xlu0 %771
      %775 = vset.pattern.permute.xlu0 0
      %776 = vperm.xlu0 %775, %v564
      %v777 = vpop.permute.xlu0 %776
      %780 = vset.pattern.permute.xlu0 0
      %781 = vperm.xlu0 %780, %v566
      %v782 = vpop.permute.xlu0 %781
      %785 = vset.pattern.permute.xlu0 0
      %786 = vperm.xlu0 %785, %v568
      %v787 = vpop.permute.xlu0 %786
      %790 = vset.pattern.permute.xlu0 0
      %791 = vperm.xlu0 %790, %v570
      %v792 = vpop.permute.xlu0 %791
      %795 = vset.pattern.permute.xlu0 0
      %796 = vperm.xlu0 %795, %v572
      %v797 = vpop.permute.xlu0 %796
      %800 = vset.pattern.permute.xlu0 0
      %801 = vperm.xlu0 %800, %v574
      %v802 = vpop.permute.xlu0 %801
      %805 = vset.pattern.permute.xlu0 0
      %806 = vperm.xlu0 %805, %v576
      %v807 = vpop.permute.xlu0 %806
      %810 = vset.pattern.permute.xlu0 0
      %811 = vperm.xlu0 %810, %v578
      %v812 = vpop.permute.xlu0 %811
      %815 = vset.pattern.permute.xlu0 0
      %816 = vperm.xlu0 %815, %v580
      %v817 = vpop.permute.xlu0 %816
      %820 = vset.pattern.permute.xlu0 0
      %821 = vperm.xlu0 %820, %v582
      %v822 = vpop.permute.xlu0 %821
      %825 = vset.pattern.permute.xlu0 0
      %826 = vperm.xlu0 %825, %v584
      %v827 = vpop.permute.xlu0 %826
      %830 = vset.pattern.permute.xlu0 0
      %831 = vperm.xlu0 %830, %v586
      %v832 = vpop.permute.xlu0 %831
      %835 = vset.pattern.permute.xlu0 0
      %836 = vperm.xlu0 %835, %v588
      %v837 = vpop.permute.xlu0 %836
      %840 = vset.pattern.permute.xlu0 0
      %841 = vperm.xlu0 %840, %v590
      %v842 = vpop.permute.xlu0 %841
      %845 = vset.pattern.permute.xlu0 0
      %846 = vperm.xlu0 %845, %v592
      %v847 = vpop.permute.xlu0 %846
      %850 = vset.pattern.permute.xlu0 0
      %851 = vperm.xlu0 %850, %v594
      %v852 = vpop.permute.xlu0 %851
      %855 = vset.pattern.permute.xlu0 0
      %856 = vperm.xlu0 %855, %v596
      %v857 = vpop.permute.xlu0 %856
      %860 = vset.pattern.permute.xlu0 0
      %861 = vperm.xlu0 %860, %v598
      %v862 = vpop.permute.xlu0 %861
      %865 = vset.pattern.permute.xlu0 0
      %866 = vperm.xlu0 %865, %v600
      %v867 = vpop.permute.xlu0 %866
      %870 = vset.pattern.permute.xlu0 0
      %871 = vperm.xlu0 %870, %v602
      %v872 = vpop.permute.xlu0 %871
      %875 = vset.pattern.permute.xlu0 0
      %876 = vperm.xlu0 %875, %v604
      %v877 = vpop.permute.xlu0 %876
      %880 = vset.pattern.permute.xlu0 0
      %881 = vperm.xlu0 %880, %v606
      %v882 = vpop.permute.xlu0 %881
      %885 = vset.pattern.permute.xlu0 0
      %886 = vperm.xlu0 %885, %v608
      %v887 = vpop.permute.xlu0 %886
      %v889 = vmul.f32 %v692, %v609
      %v890 = vmul.f32 %v692, %v610
      %v891 = vmul.f32 %v697, %v611
      %v892 = vmul.f32 %v697, %v612
      %v893 = vmul.f32 %v702, %v613
      %v894 = vmul.f32 %v702, %v614
      %v895 = vmul.f32 %v707, %v615
      %v896 = vmul.f32 %v707, %v616
      %v897 = vmul.f32 %v712, %v617
      %v898 = vmul.f32 %v712, %v618
      %v899 = vmul.f32 %v717, %v619
      %v900 = vmul.f32 %v717, %v620
      %v901 = vmul.f32 %v722, %v621
      %v902 = vmul.f32 %v722, %v622
      %v903 = vmul.f32 %v727, %v623
      %v904 = vmul.f32 %v727, %v624
      %v905 = vmul.f32 %v732, %v625
      %v906 = vmul.f32 %v732, %v626
      %v907 = vmul.f32 %v737, %v627
      %v908 = vmul.f32 %v737, %v628
      %v909 = vmul.f32 %v742, %v629
      %v910 = vmul.f32 %v742, %v630
      %v911 = vmul.f32 %v747, %v631
      %v912 = vmul.f32 %v747, %v632
      %v913 = vmul.f32 %v752, %v633
      %v914 = vmul.f32 %v752, %v634
      %v915 = vmul.f32 %v757, %v635
      %v916 = vmul.f32 %v757, %v636
      %v917 = vmul.f32 %v762, %v637
      %v918 = vmul.f32 %v762, %v638
      %v919 = vmul.f32 %v767, %v639
      %v920 = vmul.f32 %v767, %v640
      %v921 = vmul.f32 %v772, %v641
      %v922 = vmul.f32 %v772, %v642
      %v923 = vmul.f32 %v777, %v643
      %v924 = vmul.f32 %v777, %v644
      %v925 = vmul.f32 %v782, %v645
      %v926 = vmul.f32 %v782, %v646
      %v927 = vmul.f32 %v787, %v647
      %v928 = vmul.f32 %v787, %v648
      %v929 = vmul.f32 %v792, %v649
      %v930 = vmul.f32 %v792, %v650
      %v931 = vmul.f32 %v797, %v651
      %v932 = vmul.f32 %v797, %v652
      %v933 = vmul.f32 %v802, %v653
      %v934 = vmul.f32 %v802, %v654
      %v935 = vmul.f32 %v807, %v655
      %v936 = vmul.f32 %v807, %v656
      %v937 = vmul.f32 %v812, %v657
      %v938 = vmul.f32 %v812, %v658
      %v939 = vmul.f32 %v817, %v659
      %v940 = vmul.f32 %v817, %v660
      %v941 = vmul.f32 %v822, %v661
      %v942 = vmul.f32 %v822, %v662
      %v943 = vmul.f32 %v827, %v663
      %v944 = vmul.f32 %v827, %v664
      %v945 = vmul.f32 %v832, %v665
      %v946 = vmul.f32 %v832, %v666
      %v947 = vmul.f32 %v837, %v667
      %v948 = vmul.f32 %v837, %v668
      %v949 = vmul.f32 %v842, %v669
      %v950 = vmul.f32 %v842, %v670
      %v951 = vmul.f32 %v847, %v671
      %v952 = vmul.f32 %v847, %v672
      %v953 = vmul.f32 %v852, %v673
      %v954 = vmul.f32 %v852, %v674
      %v955 = vmul.f32 %v857, %v675
      %v956 = vmul.f32 %v857, %v676
      %v957 = vmul.f32 %v862, %v677
      %v958 = vmul.f32 %v862, %v678
      %v959 = vmul.f32 %v867, %v679
      %v960 = vmul.f32 %v867, %v680
      %v961 = vmul.f32 %v872, %v681
      %v962 = vmul.f32 %v872, %v682
      %v963 = vmul.f32 %v877, %v683
      %v964 = vmul.f32 %v877, %v684
      %v965 = vmul.f32 %v882, %v685
      %v966 = vmul.f32 %v882, %v686
      %v967 = vmul.f32 %v887, %v687
      %v968 = vmul.f32 %v887, %v688
      %v969 = vld [vmem:[%s301] sm:$0xff]
      %v970 = vld [vmem:[%s301 + $0x8] sm:$0xff]
      %v971 = vld [vmem:[%s301 + $0x10] sm:$0xff]
      %v972 = vld [vmem:[%s301 + $0x18] sm:$0xff]
      %v973 = vld [vmem:[%s301 + $0x20] sm:$0xff]
      %v974 = vld [vmem:[%s301 + $0x28] sm:$0xff]
      %v975 = vld [vmem:[%s301 + $0x30] sm:$0xff]
      %v976 = vld [vmem:[%s301 + $0x38] sm:$0xff]
      %v977 = vld [vmem:[%s301 + $0x40] sm:$0xff]
      %v978 = vld [vmem:[%s301 + $0x48] sm:$0xff]
      %v979 = vld [vmem:[%s301 + $0x50] sm:$0xff]
      %v980 = vld [vmem:[%s301 + $0x58] sm:$0xff]
      %v981 = vld [vmem:[%s301 + $0x60] sm:$0xff]
      %v982 = vld [vmem:[%s301 + $0x68] sm:$0xff]
      %v983 = vld [vmem:[%s301 + $0x70] sm:$0xff]
      %v984 = vld [vmem:[%s301 + $0x78] sm:$0xff]
      %v985 = vld [vmem:[%s301 + $0x80] sm:$0xff]
      %v986 = vld [vmem:[%s301 + $0x88] sm:$0xff]
      %v987 = vld [vmem:[%s301 + $0x90] sm:$0xff]
      %v988 = vld [vmem:[%s301 + $0x98] sm:$0xff]
      %v989 = vld [vmem:[%s301 + $0xa0] sm:$0xff]
      %v990 = vld [vmem:[%s301 + $0xa8] sm:$0xff]
      %v991 = vld [vmem:[%s301 + $0xb0] sm:$0xff]
      %v992 = vld [vmem:[%s301 + $0xb8] sm:$0xff]
      %v993 = vld [vmem:[%s301 + $0xc0] sm:$0xff]
      %v994 = vld [vmem:[%s301 + $0xc8] sm:$0xff]
      %v995 = vld [vmem:[%s301 + $0xd0] sm:$0xff]
      %v996 = vld [vmem:[%s301 + $0xd8] sm:$0xff]
      %v997 = vld [vmem:[%s301 + $0xe0] sm:$0xff]
      %v998 = vld [vmem:[%s301 + $0xe8] sm:$0xff]
      %v999 = vld [vmem:[%s301 + $0xf0] sm:$0xff]
      %v1000 = vld [vmem:[%s301 + $0xf8] sm:$0xff]
      %v1001 = vld [vmem:[%s301 + $0x100] sm:$0xff]
      %v1002 = vld [vmem:[%s301 + $0x108] sm:$0xff]
      %v1003 = vld [vmem:[%s301 + $0x110] sm:$0xff]
      %v1004 = vld [vmem:[%s301 + $0x118] sm:$0xff]
      %v1005 = vld [vmem:[%s301 + $0x120] sm:$0xff]
      %v1006 = vld [vmem:[%s301 + $0x128] sm:$0xff]
      %v1007 = vld [vmem:[%s301 + $0x130] sm:$0xff]
      %v1008 = vld [vmem:[%s301 + $0x138] sm:$0xff]
      %v1009 = vld [vmem:[%s301 + $0x140] sm:$0xff]
      %v1010 = vld [vmem:[%s301 + $0x148] sm:$0xff]
      %v1011 = vld [vmem:[%s301 + $0x150] sm:$0xff]
      %v1012 = vld [vmem:[%s301 + $0x158] sm:$0xff]
      %v1013 = vld [vmem:[%s301 + $0x160] sm:$0xff]
      %v1014 = vld [vmem:[%s301 + $0x168] sm:$0xff]
      %v1015 = vld [vmem:[%s301 + $0x170] sm:$0xff]
      %v1016 = vld [vmem:[%s301 + $0x178] sm:$0xff]
      %v1017 = vld [vmem:[%s301 + $0x180] sm:$0xff]
      %v1018 = vld [vmem:[%s301 + $0x188] sm:$0xff]
      %v1019 = vld [vmem:[%s301 + $0x190] sm:$0xff]
      %v1020 = vld [vmem:[%s301 + $0x198] sm:$0xff]
      %v1021 = vld [vmem:[%s301 + $0x1a0] sm:$0xff]
      %v1022 = vld [vmem:[%s301 + $0x1a8] sm:$0xff]
      %v1023 = vld [vmem:[%s301 + $0x1b0] sm:$0xff]
      %v1024 = vld [vmem:[%s301 + $0x1b8] sm:$0xff]
      %v1025 = vld [vmem:[%s301 + $0x1c0] sm:$0xff]
      %v1026 = vld [vmem:[%s301 + $0x1c8] sm:$0xff]
      %v1027 = vld [vmem:[%s301 + $0x1d0] sm:$0xff]
      %v1028 = vld [vmem:[%s301 + $0x1d8] sm:$0xff]
      %vm1029 = vcmask 523264
      %v1031 = vsel %vm1029, %v971, 0
      %v1034 = vsel %vm1029, %v974, 0
      %v1037 = vsel %vm1029, %v977, 0
      %v1040 = vsel %vm1029, %v980, 0
      %v1043 = vsel %vm1029, %v983, 0
      %v1046 = vsel %vm1029, %v986, 0
      %v1049 = vsel %vm1029, %v989, 0
      %v1052 = vsel %vm1029, %v992, 0
      %v1055 = vsel %vm1029, %v995, 0
      %v1058 = vsel %vm1029, %v998, 0
      %v1061 = vsel %vm1029, %v1001, 0
      %v1064 = vsel %vm1029, %v1004, 0
      %v1067 = vsel %vm1029, %v1007, 0
      %v1070 = vsel %vm1029, %v1010, 0
      %v1073 = vsel %vm1029, %v1013, 0
      %v1076 = vsel %vm1029, %v1016, 0
      %v1079 = vsel %vm1029, %v1019, 0
      %v1082 = vsel %vm1029, %v1022, 0
      %v1085 = vsel %vm1029, %v1025, 0
      %v1088 = vsel %vm1029, %v1028, 0
      %1090 = vmatprep.subr.mxu0 %v890
      %1091 = vmatpush1.msra.mxu0 %v889
      %1092 = vmatprep.subr.mxu0 %v892
      %1093 = vmatpush1.msra.mxu0 %v891
      %1094 = vmatprep.subr.mxu0 %v894
      %1095 = vmatpush1.msra.mxu0 %v893
      %1096 = vmatprep.subr.mxu0 %v896
      %1097 = vmatpush1.msra.mxu0 %v895
      %1098 = vmatprep.subr.mxu0 %v898
      %1099 = vmatpush1.msra.mxu0 %v897
      %1100 = vmatprep.subr.mxu0 %v900
      %1101 = vmatpush1.msra.mxu0 %v899
      %1102 = vmatprep.subr.mxu0 %v902
      %1103 = vmatpush1.msra.mxu0 %v901
      %1104 = vmatprep.subr.mxu0 %v904
      %1105 = vmatpush1.msra.mxu0 %v903
      %1106 = vmatprep.subr.mxu0 %v906
      %1107 = vmatpush1.msra.mxu0 %v905
      %1108 = vmatprep.subr.mxu0 %v908
      %1109 = vmatpush1.msra.mxu0 %v907
      %1110 = vmatprep.subr.mxu0 %v910
      %1111 = vmatpush1.msra.mxu0 %v909
      %1112 = vmatprep.subr.mxu0 %v912
      %1113 = vmatpush1.msra.mxu0 %v911
      %1114 = vmatprep.subr.mxu0 %v914
      %1115 = vmatpush1.msra.mxu0 %v913
      %1116 = vmatprep.subr.mxu0 %v916
      %1117 = vmatpush1.msra.mxu0 %v915
      %1118 = vmatprep.subr.mxu0 %v918
      %1119 = vmatpush1.msra.mxu0 %v917
      %1120 = vmatprep.subr.mxu0 %v920
      %1121 = vmatpush1.msra.mxu0 %v919
      %1122 = vmatprep.subr.mxu0 %v922
      %1123 = vmatpush1.msra.mxu0 %v921
      %1124 = vmatprep.subr.mxu0 %v924
      %1125 = vmatpush1.msra.mxu0 %v923
      %1126 = vmatprep.subr.mxu0 %v926
      %1127 = vmatpush1.msra.mxu0 %v925
      %1128 = vmatprep.subr.mxu0 %v928
      %1129 = vmatpush1.msra.mxu0 %v927
      %1130 = vmatprep.subr.mxu0 %v930
      %1131 = vmatpush1.msra.mxu0 %v929
      %1132 = vmatprep.subr.mxu0 %v932
      %1133 = vmatpush1.msra.mxu0 %v931
      %1134 = vmatprep.subr.mxu0 %v934
      %1135 = vmatpush1.msra.mxu0 %v933
      %1136 = vmatprep.subr.mxu0 %v936
      %1137 = vmatpush1.msra.mxu0 %v935
      %1138 = vmatprep.subr.mxu0 %v938
      %1139 = vmatpush1.msra.mxu0 %v937
      %1140 = vmatprep.subr.mxu0 %v940
      %1141 = vmatpush1.msra.mxu0 %v939
      %1142 = vmatprep.subr.mxu0 %v942
      %1143 = vmatpush1.msra.mxu0 %v941
      %1144 = vmatprep.subr.mxu0 %v944
      %1145 = vmatpush1.msra.mxu0 %v943
      %1146 = vmatprep.subr.mxu0 %v946
      %1147 = vmatpush1.msra.mxu0 %v945
      %1148 = vmatprep.subr.mxu0 %v948
      %1149 = vmatpush1.msra.mxu0 %v947
      %1150 = vmatprep.subr.mxu0 %v950
      %1151 = vmatpush1.msra.mxu0 %v949
      %1152 = vmatprep.subr.mxu0 %v952
      %1153 = vmatpush1.msra.mxu0 %v951
      %1154 = vmatprep.mubr.f32.mxu0 %v970
      %1155 = vmatmul.mubr.f32.gmra.mrb[0].mxu0 %v969
      %v1156 = vpop.f32.mrb[0].mxu0
      %v1157 = vadd.f32 0.0, %v1156
      %v1158 = vpop.f32.mrb[0].mxu0
      %v1159 = vadd.f32 0.0, %v1158
      %1160 = vmatprep.mubr.f32.mxu0 %v973
      %1161 = vmatmul.mubr.f32.gmra.mrb[0].mxu0 %v972
      %v1162 = vpop.f32.mrb[0].mxu0
      %v1163 = vadd.f32 0.0, %v1162
      %v1164 = vpop.f32.mrb[0].mxu0
      %v1165 = vadd.f32 0.0, %v1164
      %1166 = vmatprep.mubr.f32.mxu0 %v976
      %1167 = vmatmul.mubr.f32.gmra.mrb[0].mxu0 %v975
      %v1168 = vpop.f32.mrb[0].mxu0
      %v1169 = vadd.f32 0.0, %v1168
      %v1170 = vpop.f32.mrb[0].mxu0
      %v1171 = vadd.f32 0.0, %v1170
      %1172 = vmatprep.mubr.f32.mxu0 %v979
      %1173 = vmatmul.mubr.f32.gmra.mrb[0].mxu0 %v978
      %v1174 = vpop.f32.mrb[0].mxu0
      %v1175 = vadd.f32 0.0, %v1174
      %v1176 = vpop.f32.mrb[0].mxu0
      %v1177 = vadd.f32 0.0, %v1176
      %1178 = vmatprep.mubr.f32.mxu0 %v982
      %1179 = vmatmul.mubr.f32.gmra.mrb[0].mxu0 %v981
      %v1180 = vpop.f32.mrb[0].mxu0
      %v1181 = vadd.f32 0.0, %v1180
      %v1182 = vpop.f32.mrb[0].mxu0
      %v1183 = vadd.f32 0.0, %v1182
      %1184 = vmatprep.mubr.f32.mxu0 %v985
      %1185 = vmatmul.mubr.f32.gmra.mrb[0].mxu0 %v984
      %v1186 = vpop.f32.mrb[0].mxu0
      %v1187 = vadd.f32 0.0, %v1186
      %v1188 = vpop.f32.mrb[0].mxu0
      %v1189 = vadd.f32 0.0, %v1188
      %1190 = vmatprep.mubr.f32.mxu0 %v988
      %1191 = vmatmul.mubr.f32.gmra.mrb[0].mxu0 %v987
      %v1192 = vpop.f32.mrb[0].mxu0
      %v1193 = vadd.f32 0.0, %v1192
      %v1194 = vpop.f32.mrb[0].mxu0
      %v1195 = vadd.f32 0.0, %v1194
      %1196 = vmatprep.mubr.f32.mxu0 %v991
      %1197 = vmatmul.mubr.f32.gmra.mrb[0].mxu0 %v990
      %v1198 = vpop.f32.mrb[0].mxu0
      %v1199 = vadd.f32 0.0, %v1198
      %v1200 = vpop.f32.mrb[0].mxu0
      %v1201 = vadd.f32 0.0, %v1200
      %1202 = vmatprep.mubr.f32.mxu0 %v994
      %1203 = vmatmul.mubr.f32.gmra.mrb[0].mxu0 %v993
      %v1204 = vpop.f32.mrb[0].mxu0
      %v1205 = vadd.f32 0.0, %v1204
      %v1206 = vpop.f32.mrb[0].mxu0
      %v1207 = vadd.f32 0.0, %v1206
      %1208 = vmatprep.mubr.f32.mxu0 %v997
      %1209 = vmatmul.mubr.f32.gmra.mrb[0].mxu0 %v996
      %v1210 = vpop.f32.mrb[0].mxu0
      %v1211 = vadd.f32 0.0, %v1210
      %v1212 = vpop.f32.mrb[0].mxu0
      %v1213 = vadd.f32 0.0, %v1212
      %1214 = vmatprep.mubr.f32.mxu0 %v1000
      %1215 = vmatmul.mubr.f32.gmra.mrb[0].mxu0 %v999
      %v1216 = vpop.f32.mrb[0].mxu0
      %v1217 = vadd.f32 0.0, %v1216
      %v1218 = vpop.f32.mrb[0].mxu0
      %v1219 = vadd.f32 0.0, %v1218
      %1220 = vmatprep.mubr.f32.mxu0 %v1003
      %1221 = vmatmul.mubr.f32.gmra.mrb[0].mxu0 %v1002
      %v1222 = vpop.f32.mrb[0].mxu0
      %v1223 = vadd.f32 0.0, %v1222
      %v1224 = vpop.f32.mrb[0].mxu0
      %v1225 = vadd.f32 0.0, %v1224
      %1226 = vmatprep.mubr.f32.mxu0 %v1006
      %1227 = vmatmul.mubr.f32.gmra.mrb[0].mxu0 %v1005
      %v1228 = vpop.f32.mrb[0].mxu0
      %v1229 = vadd.f32 0.0, %v1228
      %v1230 = vpop.f32.mrb[0].mxu0
      %v1231 = vadd.f32 0.0, %v1230
      %1232 = vmatprep.mubr.f32.mxu0 %v1009
      %1233 = vmatmul.mubr.f32.gmra.mrb[0].mxu0 %v1008
      %v1234 = vpop.f32.mrb[0].mxu0
      %v1235 = vadd.f32 0.0, %v1234
      %v1236 = vpop.f32.mrb[0].mxu0
      %v1237 = vadd.f32 0.0, %v1236
      %1238 = vmatprep.mubr.f32.mxu0 %v1012
      %1239 = vmatmul.mubr.f32.gmra.mrb[0].mxu0 %v1011
      %v1240 = vpop.f32.mrb[0].mxu0
      %v1241 = vadd.f32 0.0, %v1240
      %v1242 = vpop.f32.mrb[0].mxu0
      %v1243 = vadd.f32 0.0, %v1242
      %1244 = vmatprep.mubr.f32.mxu0 %v1015
      %1245 = vmatmul.mubr.f32.gmra.mrb[0].mxu0 %v1014
      %v1246 = vpop.f32.mrb[0].mxu0
      %v1247 = vadd.f32 0.0, %v1246
      %v1248 = vpop.f32.mrb[0].mxu0
      %v1249 = vadd.f32 0.0, %v1248
      %1250 = vmatprep.mubr.f32.mxu0 %v1018
      %1251 = vmatmul.mubr.f32.gmra.mrb[0].mxu0 %v1017
      %v1252 = vpop.f32.mrb[0].mxu0
      %v1253 = vadd.f32 0.0, %v1252
      %v1254 = vpop.f32.mrb[0].mxu0
      %v1255 = vadd.f32 0.0, %v1254
      %1256 = vmatprep.mubr.f32.mxu0 %v1021
      %1257 = vmatmul.mubr.f32.gmra.mrb[0].mxu0 %v1020
      %v1258 = vpop.f32.mrb[0].mxu0
      %v1259 = vadd.f32 0.0, %v1258
      %v1260 = vpop.f32.mrb[0].mxu0
      %v1261 = vadd.f32 0.0, %v1260
      %1262 = vmatprep.mubr.f32.mxu0 %v1024
      %1263 = vmatmul.mubr.f32.gmra.mrb[0].mxu0 %v1023
      %v1264 = vpop.f32.mrb[0].mxu0
      %v1265 = vadd.f32 0.0, %v1264
      %v1266 = vpop.f32.mrb[0].mxu0
      %v1267 = vadd.f32 0.0, %v1266
      %1268 = vmatprep.mubr.f32.mxu0 %v1027
      %1269 = vmatmul.mubr.f32.gmra.mrb[0].mxu0 %v1026
      %v1270 = vpop.f32.mrb[0].mxu0
      %v1271 = vadd.f32 0.0, %v1270
      %v1272 = vpop.f32.mrb[0].mxu0
      %v1273 = vadd.f32 0.0, %v1272
      %1274 = vdwg.mxu0
      %1275 = vmatprep.subr.mxu0 %v954
      %1276 = vmatpush1.msra.mxu0 %v953
      %1277 = vmatprep.subr.mxu0 %v956
      %1278 = vmatpush1.msra.mxu0 %v955
      %1279 = vmatprep.subr.mxu0 %v958
      %1280 = vmatpush1.msra.mxu0 %v957
      %1281 = vmatprep.subr.mxu0 %v960
      %1282 = vmatpush1.msra.mxu0 %v959
      %1283 = vmatprep.subr.mxu0 %v962
      %1284 = vmatpush1.msra.mxu0 %v961
      %1285 = vmatprep.subr.mxu0 %v964
      %1286 = vmatpush1.msra.mxu0 %v963
      %1287 = vmatprep.subr.mxu0 %v966
      %1288 = vmatpush1.msra.mxu0 %v965
      %1289 = vmatprep.subr.mxu0 %v968
      %1290 = vmatpush1.msra.mxu0 %v967
      %1291 = vmatprep.subr.mxu0 0.0
      %1292 = vmatpush1.msra.mxu0 0.0
      %1293 = vmatprep.subr.mxu0 0.0
      %1294 = vmatpush1.msra.mxu0 0.0
      %1295 = vmatprep.subr.mxu0 0.0
      %1296 = vmatpush1.msra.mxu0 0.0
      %1297 = vmatprep.subr.mxu0 0.0
      %1298 = vmatpush1.msra.mxu0 0.0
      %1299 = vmatprep.subr.mxu0 0.0
      %1300 = vmatpush1.msra.mxu0 0.0
      %1301 = vmatprep.subr.mxu0 0.0
      %1302 = vmatpush1.msra.mxu0 0.0
      %1303 = vmatprep.subr.mxu0 0.0
      %1304 = vmatpush1.msra.mxu0 0.0
      %1305 = vmatprep.subr.mxu0 0.0
      %1306 = vmatpush1.msra.mxu0 0.0
      %1307 = vmatprep.subr.mxu0 0.0
      %1308 = vmatpush1.msra.mxu0 0.0
      %1309 = vmatprep.subr.mxu0 0.0
      %1310 = vmatpush1.msra.mxu0 0.0
      %1311 = vmatprep.subr.mxu0 0.0
      %1312 = vmatpush1.msra.mxu0 0.0
      %1313 = vmatprep.subr.mxu0 0.0
      %1314 = vmatpush1.msra.mxu0 0.0
      %1315 = vmatprep.subr.mxu0 0.0
      %1316 = vmatpush1.msra.mxu0 0.0
      %1317 = vmatprep.subr.mxu0 0.0
      %1318 = vmatpush1.msra.mxu0 0.0
      %1319 = vmatprep.subr.mxu0 0.0
      %1320 = vmatpush1.msra.mxu0 0.0
      %1321 = vmatprep.subr.mxu0 0.0
      %1322 = vmatpush1.msra.mxu0 0.0
      %1323 = vmatprep.subr.mxu0 0.0
      %1324 = vmatpush1.msra.mxu0 0.0
      %1325 = vmatprep.subr.mxu0 0.0
      %1326 = vmatpush1.msra.mxu0 0.0
      %1327 = vmatprep.subr.mxu0 0.0
      %1328 = vmatpush1.msra.mxu0 0.0
      %1329 = vmatprep.subr.mxu0 0.0
      %1330 = vmatpush1.msra.mxu0 0.0
      %1331 = vmatprep.subr.mxu0 0.0
      %1332 = vmatpush1.msra.mxu0 0.0
      %1333 = vmatprep.subr.mxu0 0.0
      %1334 = vmatpush1.msra.mxu0 0.0
      %1335 = vmatprep.subr.mxu0 0.0
      %1336 = vmatpush1.msra.mxu0 0.0
      %1337 = vmatprep.subr.mxu0 0.0
      %1338 = vmatpush1.msra.mxu0 0.0
      %1339 = vmatprep.mubr.f32.mxu0 0.0
      %1340 = vmatmul.mubr.f32.gmra.mrb[0].mxu0 %v1031
      %v1341 = vpop.f32.mrb[0].mxu0
      %v1342 = vadd.f32 %v1157, %v1341
      %v1343 = vpop.f32.mrb[0].mxu0
      %v1344 = vadd.f32 %v1159, %v1343
      %1345 = vmatprep.mubr.f32.mxu0 0.0
      %1346 = vmatmul.mubr.f32.gmra.mrb[0].mxu0 %v1034
      %v1347 = vpop.f32.mrb[0].mxu0
      %v1348 = vadd.f32 %v1163, %v1347
      %v1349 = vpop.f32.mrb[0].mxu0
      %v1350 = vadd.f32 %v1165, %v1349
      %1351 = vmatprep.mubr.f32.mxu0 0.0
      %1352 = vmatmul.mubr.f32.gmra.mrb[0].mxu0 %v1037
      %v1353 = vpop.f32.mrb[0].mxu0
      %v1354 = vadd.f32 %v1169, %v1353
      %v1355 = vpop.f32.mrb[0].mxu0
      %v1356 = vadd.f32 %v1171, %v1355
      %1357 = vmatprep.mubr.f32.mxu0 0.0
      %1358 = vmatmul.mubr.f32.gmra.mrb[0].mxu0 %v1040
      %v1359 = vpop.f32.mrb[0].mxu0
      %v1360 = vadd.f32 %v1175, %v1359
      %v1361 = vpop.f32.mrb[0].mxu0
      %v1362 = vadd.f32 %v1177, %v1361
      %1363 = vmatprep.mubr.f32.mxu0 0.0
      %1364 = vmatmul.mubr.f32.gmra.mrb[0].mxu0 %v1043
      %v1365 = vpop.f32.mrb[0].mxu0
      %v1366 = vadd.f32 %v1181, %v1365
      %v1367 = vpop.f32.mrb[0].mxu0
      %v1368 = vadd.f32 %v1183, %v1367
      %1369 = vmatprep.mubr.f32.mxu0 0.0
      %1370 = vmatmul.mubr.f32.gmra.mrb[0].mxu0 %v1046
      %v1371 = vpop.f32.mrb[0].mxu0
      %v1372 = vadd.f32 %v1187, %v1371
      %v1373 = vpop.f32.mrb[0].mxu0
      %v1374 = vadd.f32 %v1189, %v1373
      %1375 = vmatprep.mubr.f32.mxu0 0.0
      %1376 = vmatmul.mubr.f32.gmra.mrb[0].mxu0 %v1049
      %v1377 = vpop.f32.mrb[0].mxu0
      %v1378 = vadd.f32 %v1193, %v1377
      %v1379 = vpop.f32.mrb[0].mxu0
      %v1380 = vadd.f32 %v1195, %v1379
      %1381 = vmatprep.mubr.f32.mxu0 0.0
      %1382 = vmatmul.mubr.f32.gmra.mrb[0].mxu0 %v1052
      %v1383 = vpop.f32.mrb[0].mxu0
      %v1384 = vadd.f32 %v1199, %v1383
      %v1385 = vpop.f32.mrb[0].mxu0
      %v1386 = vadd.f32 %v1201, %v1385
      %1387 = vmatprep.mubr.f32.mxu0 0.0
      %1388 = vmatmul.mubr.f32.gmra.mrb[0].mxu0 %v1055
      %v1389 = vpop.f32.mrb[0].mxu0
      %v1390 = vadd.f32 %v1205, %v1389
      %v1391 = vpop.f32.mrb[0].mxu0
      %v1392 = vadd.f32 %v1207, %v1391
      %1393 = vmatprep.mubr.f32.mxu0 0.0
      %1394 = vmatmul.mubr.f32.gmra.mrb[0].mxu0 %v1058
      %v1395 = vpop.f32.mrb[0].mxu0
      %v1396 = vadd.f32 %v1211, %v1395
      %v1397 = vpop.f32.mrb[0].mxu0
      %v1398 = vadd.f32 %v1213, %v1397
      %1399 = vmatprep.mubr.f32.mxu0 0.0
      %1400 = vmatmul.mubr.f32.gmra.mrb[0].mxu0 %v1061
      %v1401 = vpop.f32.mrb[0].mxu0
      %v1402 = vadd.f32 %v1217, %v1401
      %v1403 = vpop.f32.mrb[0].mxu0
      %v1404 = vadd.f32 %v1219, %v1403
      %1405 = vmatprep.mubr.f32.mxu0 0.0
      %1406 = vmatmul.mubr.f32.gmra.mrb[0].mxu0 %v1064
      %v1407 = vpop.f32.mrb[0].mxu0
      %v1408 = vadd.f32 %v1223, %v1407
      %v1409 = vpop.f32.mrb[0].mxu0
      %v1410 = vadd.f32 %v1225, %v1409
      %1411 = vmatprep.mubr.f32.mxu0 0.0
      %1412 = vmatmul.mubr.f32.gmra.mrb[0].mxu0 %v1067
      %v1413 = vpop.f32.mrb[0].mxu0
      %v1414 = vadd.f32 %v1229, %v1413
      %v1415 = vpop.f32.mrb[0].mxu0
      %v1416 = vadd.f32 %v1231, %v1415
      %1417 = vmatprep.mubr.f32.mxu0 0.0
      %1418 = vmatmul.mubr.f32.gmra.mrb[0].mxu0 %v1070
      %v1419 = vpop.f32.mrb[0].mxu0
      %v1420 = vadd.f32 %v1235, %v1419
      %v1421 = vpop.f32.mrb[0].mxu0
      %v1422 = vadd.f32 %v1237, %v1421
      %1423 = vmatprep.mubr.f32.mxu0 0.0
      %1424 = vmatmul.mubr.f32.gmra.mrb[0].mxu0 %v1073
      %v1425 = vpop.f32.mrb[0].mxu0
      %v1426 = vadd.f32 %v1241, %v1425
      %v1427 = vpop.f32.mrb[0].mxu0
      %v1428 = vadd.f32 %v1243, %v1427
      %1429 = vmatprep.mubr.f32.mxu0 0.0
      %1430 = vmatmul.mubr.f32.gmra.mrb[0].mxu0 %v1076
      %v1431 = vpop.f32.mrb[0].mxu0
      %v1432 = vadd.f32 %v1247, %v1431
      %v1433 = vpop.f32.mrb[0].mxu0
      %v1434 = vadd.f32 %v1249, %v1433
      %1435 = vmatprep.mubr.f32.mxu0 0.0
      %1436 = vmatmul.mubr.f32.gmra.mrb[0].mxu0 %v1079
      %v1437 = vpop.f32.mrb[0].mxu0
      %v1438 = vadd.f32 %v1253, %v1437
      %v1439 = vpop.f32.mrb[0].mxu0
      %v1440 = vadd.f32 %v1255, %v1439
      %1441 = vmatprep.mubr.f32.mxu0 0.0
      %1442 = vmatmul.mubr.f32.gmra.mrb[0].mxu0 %v1082
      %v1443 = vpop.f32.mrb[0].mxu0
      %v1444 = vadd.f32 %v1259, %v1443
      %v1445 = vpop.f32.mrb[0].mxu0
      %v1446 = vadd.f32 %v1261, %v1445
      %1447 = vmatprep.mubr.f32.mxu0 0.0
      %1448 = vmatmul.mubr.f32.gmra.mrb[0].mxu0 %v1085
      %v1449 = vpop.f32.mrb[0].mxu0
      %v1450 = vadd.f32 %v1265, %v1449
      %v1451 = vpop.f32.mrb[0].mxu0
      %v1452 = vadd.f32 %v1267, %v1451
      %1453 = vmatprep.mubr.f32.mxu0 0.0
      %1454 = vmatmul.mubr.f32.gmra.mrb[0].mxu0 %v1088
      %v1455 = vpop.f32.mrb[0].mxu0
      %v1456 = vadd.f32 %v1271, %v1455
      %v1457 = vpop.f32.mrb[0].mxu0
      %v1458 = vadd.f32 %v1273, %v1457
      %1459 = vdwg.mxu0
      %v1460 = vadd.f32 %v1342, %v1344
      %1461 = vadd.xlane.f32.xlu0 %v1460
      %v1462 = vpop.xlane.xlu0 %1461
      %v1463 = vadd.f32 %v1348, %v1350
      %1464 = vadd.xlane.f32.xlu0 %v1463
      %v1465 = vpop.xlane.xlu0 %1464
      %v1466 = vadd.f32 %v1354, %v1356
      %1467 = vadd.xlane.f32.xlu0 %v1466
      %v1468 = vpop.xlane.xlu0 %1467
      %v1469 = vadd.f32 %v1360, %v1362
      %1470 = vadd.xlane.f32.xlu0 %v1469
      %v1471 = vpop.xlane.xlu0 %1470
      %v1472 = vadd.f32 %v1366, %v1368
      %1473 = vadd.xlane.f32.xlu0 %v1472
      %v1474 = vpop.xlane.xlu0 %1473
      %v1475 = vadd.f32 %v1372, %v1374
      %1476 = vadd.xlane.f32.xlu0 %v1475
      %v1477 = vpop.xlane.xlu0 %1476
      %v1478 = vadd.f32 %v1378, %v1380
      %1479 = vadd.xlane.f32.xlu0 %v1478
      %v1480 = vpop.xlane.xlu0 %1479
      %v1481 = vadd.f32 %v1384, %v1386
      %1482 = vadd.xlane.f32.xlu0 %v1481
      %v1483 = vpop.xlane.xlu0 %1482
      %v1484 = vadd.f32 %v1390, %v1392
      %1485 = vadd.xlane.f32.xlu0 %v1484
      %v1486 = vpop.xlane.xlu0 %1485
      %v1487 = vadd.f32 %v1396, %v1398
      %1488 = vadd.xlane.f32.xlu0 %v1487
      %v1489 = vpop.xlane.xlu0 %1488
      %v1490 = vadd.f32 %v1402, %v1404
      %1491 = vadd.xlane.f32.xlu0 %v1490
      %v1492 = vpop.xlane.xlu0 %1491
      %v1493 = vadd.f32 %v1408, %v1410
      %1494 = vadd.xlane.f32.xlu0 %v1493
      %v1495 = vpop.xlane.xlu0 %1494
      %v1496 = vadd.f32 %v1414, %v1416
      %1497 = vadd.xlane.f32.xlu0 %v1496
      %v1498 = vpop.xlane.xlu0 %1497
      %v1499 = vadd.f32 %v1420, %v1422
      %1500 = vadd.xlane.f32.xlu0 %v1499
      %v1501 = vpop.xlane.xlu0 %1500
      %v1502 = vadd.f32 %v1426, %v1428
      %1503 = vadd.xlane.f32.xlu0 %v1502
      %v1504 = vpop.xlane.xlu0 %1503
      %v1505 = vadd.f32 %v1432, %v1434
      %1506 = vadd.xlane.f32.xlu0 %v1505
      %v1507 = vpop.xlane.xlu0 %1506
      %v1508 = vadd.f32 %v1438, %v1440
      %1509 = vadd.xlane.f32.xlu0 %v1508
      %v1510 = vpop.xlane.xlu0 %1509
      %v1511 = vadd.f32 %v1444, %v1446
      %1512 = vadd.xlane.f32.xlu0 %v1511
      %v1513 = vpop.xlane.xlu0 %1512
      %v1514 = vadd.f32 %v1450, %v1452
      %1515 = vadd.xlane.f32.xlu0 %v1514
      %v1516 = vpop.xlane.xlu0 %1515
      %v1517 = vadd.f32 %v1456, %v1458
      %1518 = vadd.xlane.f32.xlu0 %v1517
      %v1519 = vpop.xlane.xlu0 %1518
      %v1520 = vmul.f32 %v1342, %v1342
      %v1521 = vmul.f32 %v1344, %v1344
      %v1522 = vmul.f32 %v1348, %v1348
      %v1523 = vmul.f32 %v1350, %v1350
      %v1524 = vmul.f32 %v1354, %v1354
      %v1525 = vmul.f32 %v1356, %v1356
      %v1526 = vmul.f32 %v1360, %v1360
      %v1527 = vmul.f32 %v1362, %v1362
      %v1528 = vmul.f32 %v1366, %v1366
      %v1529 = vmul.f32 %v1368, %v1368
      %v1530 = vmul.f32 %v1372, %v1372
      %v1531 = vmul.f32 %v1374, %v1374
      %v1532 = vmul.f32 %v1378, %v1378
      %v1533 = vmul.f32 %v1380, %v1380
      %v1534 = vmul.f32 %v1384, %v1384
      %v1535 = vmul.f32 %v1386, %v1386
      %v1536 = vmul.f32 %v1390, %v1390
      %v1537 = vmul.f32 %v1392, %v1392
      %v1538 = vmul.f32 %v1396, %v1396
      %v1539 = vmul.f32 %v1398, %v1398
      %v1540 = vmul.f32 %v1402, %v1402
      %v1541 = vmul.f32 %v1404, %v1404
      %v1542 = vmul.f32 %v1408, %v1408
      %v1543 = vmul.f32 %v1410, %v1410
      %v1544 = vmul.f32 %v1414, %v1414
      %v1545 = vmul.f32 %v1416, %v1416
      %v1546 = vmul.f32 %v1420, %v1420
      %v1547 = vmul.f32 %v1422, %v1422
      %v1548 = vmul.f32 %v1426, %v1426
      %v1549 = vmul.f32 %v1428, %v1428
      %v1550 = vmul.f32 %v1432, %v1432
      %v1551 = vmul.f32 %v1434, %v1434
      %v1552 = vmul.f32 %v1438, %v1438
      %v1553 = vmul.f32 %v1440, %v1440
      %v1554 = vmul.f32 %v1444, %v1444
      %v1555 = vmul.f32 %v1446, %v1446
      %v1556 = vmul.f32 %v1450, %v1450
      %v1557 = vmul.f32 %v1452, %v1452
      %v1558 = vmul.f32 %v1456, %v1456
      %v1559 = vmul.f32 %v1458, %v1458
      %v1560 = vadd.f32 %v1520, %v1521
      %1561 = vadd.xlane.f32.xlu0 %v1560
      %v1562 = vpop.xlane.xlu0 %1561
      %v1563 = vadd.f32 %v1522, %v1523
      %1564 = vadd.xlane.f32.xlu0 %v1563
      %v1565 = vpop.xlane.xlu0 %1564
      %v1566 = vadd.f32 %v1524, %v1525
      %1567 = vadd.xlane.f32.xlu0 %v1566
      %v1568 = vpop.xlane.xlu0 %1567
      %v1569 = vadd.f32 %v1526, %v1527
      %1570 = vadd.xlane.f32.xlu0 %v1569
      %v1571 = vpop.xlane.xlu0 %1570
      %v1572 = vadd.f32 %v1528, %v1529
      %1573 = vadd.xlane.f32.xlu0 %v1572
      %v1574 = vpop.xlane.xlu0 %1573
      %v1575 = vadd.f32 %v1530, %v1531
      %1576 = vadd.xlane.f32.xlu0 %v1575
      %v1577 = vpop.xlane.xlu0 %1576
      %v1578 = vadd.f32 %v1532, %v1533
      %1579 = vadd.xlane.f32.xlu0 %v1578
      %v1580 = vpop.xlane.xlu0 %1579
      %v1581 = vadd.f32 %v1534, %v1535
      %1582 = vadd.xlane.f32.xlu0 %v1581
      %v1583 = vpop.xlane.xlu0 %1582
      %v1584 = vadd.f32 %v1536, %v1537
      %1585 = vadd.xlane.f32.xlu0 %v1584
      %v1586 = vpop.xlane.xlu0 %1585
      %v1587 = vadd.f32 %v1538, %v1539
      %1588 = vadd.xlane.f32.xlu0 %v1587
      %v1589 = vpop.xlane.xlu0 %1588
      %v1590 = vadd.f32 %v1540, %v1541
      %1591 = vadd.xlane.f32.xlu0 %v1590
      %v1592 = vpop.xlane.xlu0 %1591
      %v1593 = vadd.f32 %v1542, %v1543
      %1594 = vadd.xlane.f32.xlu0 %v1593
      %v1595 = vpop.xlane.xlu0 %1594
      %v1596 = vadd.f32 %v1544, %v1545
      %1597 = vadd.xlane.f32.xlu0 %v1596
      %v1598 = vpop.xlane.xlu0 %1597
      %v1599 = vadd.f32 %v1546, %v1547
      %1600 = vadd.xlane.f32.xlu0 %v1599
      %v1601 = vpop.xlane.xlu0 %1600
      %v1602 = vadd.f32 %v1548, %v1549
      %1603 = vadd.xlane.f32.xlu0 %v1602
      %v1604 = vpop.xlane.xlu0 %1603
      %v1605 = vadd.f32 %v1550, %v1551
      %1606 = vadd.xlane.f32.xlu0 %v1605
      %v1607 = vpop.xlane.xlu0 %1606
      %v1608 = vadd.f32 %v1552, %v1553
      %1609 = vadd.xlane.f32.xlu0 %v1608
      %v1610 = vpop.xlane.xlu0 %1609
      %v1611 = vadd.f32 %v1554, %v1555
      %1612 = vadd.xlane.f32.xlu0 %v1611
      %v1613 = vpop.xlane.xlu0 %1612
      %v1614 = vadd.f32 %v1556, %v1557
      %1615 = vadd.xlane.f32.xlu0 %v1614
      %v1616 = vpop.xlane.xlu0 %1615
      %v1617 = vadd.f32 %v1558, %v1559
      %1618 = vadd.xlane.f32.xlu0 %v1617
      %v1619 = vpop.xlane.xlu0 %1618
      %v1620 = vmul.f32 %v1462, 0.0051020407
      %v1621 = vmul.f32 %v1465, 0.0051020407
      %v1622 = vmul.f32 %v1468, 0.0051020407
      %v1623 = vmul.f32 %v1471, 0.0051020407
      %v1624 = vmul.f32 %v1474, 0.0051020407
      %v1625 = vmul.f32 %v1477, 0.0051020407
      %v1626 = vmul.f32 %v1480, 0.0051020407
      %v1627 = vmul.f32 %v1483, 0.0051020407
      %v1628 = vmul.f32 %v1486, 0.0051020407
      %v1629 = vmul.f32 %v1489, 0.0051020407
      %v1630 = vmul.f32 %v1492, 0.0051020407
      %v1631 = vmul.f32 %v1495, 0.0051020407
      %v1632 = vmul.f32 %v1498, 0.0051020407
      %v1633 = vmul.f32 %v1501, 0.0051020407
      %v1634 = vmul.f32 %v1504, 0.0051020407
      %v1635 = vmul.f32 %v1507, 0.0051020407
      %v1636 = vmul.f32 %v1510, 0.0051020407
      %v1637 = vmul.f32 %v1513, 0.0051020407
      %v1638 = vmul.f32 %v1516, 0.0051020407
      %v1639 = vmul.f32 %v1519, 0.0051020407
      %v1640 = vmul.f32 %v1562, 0.0051020407
      %v1641 = vmul.f32 %v1565, 0.0051020407
      %v1642 = vmul.f32 %v1568, 0.0051020407
      %v1643 = vmul.f32 %v1571, 0.0051020407
      %v1644 = vmul.f32 %v1574, 0.0051020407
      %v1645 = vmul.f32 %v1577, 0.0051020407
      %v1646 = vmul.f32 %v1580, 0.0051020407
      %v1647 = vmul.f32 %v1583, 0.0051020407
      %v1648 = vmul.f32 %v1586, 0.0051020407
      %v1649 = vmul.f32 %v1589, 0.0051020407
      %v1650 = vmul.f32 %v1592, 0.0051020407
      %v1651 = vmul.f32 %v1595, 0.0051020407
      %v1652 = vmul.f32 %v1598, 0.0051020407
      %v1653 = vmul.f32 %v1601, 0.0051020407
      %v1654 = vmul.f32 %v1604, 0.0051020407
      %v1655 = vmul.f32 %v1607, 0.0051020407
      %v1656 = vmul.f32 %v1610, 0.0051020407
      %v1657 = vmul.f32 %v1613, 0.0051020407
      %v1658 = vmul.f32 %v1616, 0.0051020407
      %v1659 = vmul.f32 %v1619, 0.0051020407
      %v1660 = vmul.f32 %v1620, %v1620
      %v1661 = vmul.f32 %v1621, %v1621
      %v1662 = vmul.f32 %v1622, %v1622
      %v1663 = vmul.f32 %v1623, %v1623
      %v1664 = vmul.f32 %v1624, %v1624
      %v1665 = vmul.f32 %v1625, %v1625
      %v1666 = vmul.f32 %v1626, %v1626
      %v1667 = vmul.f32 %v1627, %v1627
      %v1668 = vmul.f32 %v1628, %v1628
      %v1669 = vmul.f32 %v1629, %v1629
      %v1670 = vmul.f32 %v1630, %v1630
      %v1671 = vmul.f32 %v1631, %v1631
      %v1672 = vmul.f32 %v1632, %v1632
      %v1673 = vmul.f32 %v1633, %v1633
      %v1674 = vmul.f32 %v1634, %v1634
      %v1675 = vmul.f32 %v1635, %v1635
      %v1676 = vmul.f32 %v1636, %v1636
      %v1677 = vmul.f32 %v1637, %v1637
      %v1678 = vmul.f32 %v1638, %v1638
      %v1679 = vmul.f32 %v1639, %v1639
      %v1680 = vsub.f32 %v1640, %v1660
      %v1681 = vsub.f32 %v1641, %v1661
      %v1682 = vsub.f32 %v1642, %v1662
      %v1683 = vsub.f32 %v1643, %v1663
      %v1684 = vsub.f32 %v1644, %v1664
      %v1685 = vsub.f32 %v1645, %v1665
      %v1686 = vsub.f32 %v1646, %v1666
      %v1687 = vsub.f32 %v1647, %v1667
      %v1688 = vsub.f32 %v1648, %v1668
      %v1689 = vsub.f32 %v1649, %v1669
      %v1690 = vsub.f32 %v1650, %v1670
      %v1691 = vsub.f32 %v1651, %v1671
      %v1692 = vsub.f32 %v1652, %v1672
      %v1693 = vsub.f32 %v1653, %v1673
      %v1694 = vsub.f32 %v1654, %v1674
      %v1695 = vsub.f32 %v1655, %v1675
      %v1696 = vsub.f32 %v1656, %v1676
      %v1697 = vsub.f32 %v1657, %v1677
      %v1698 = vsub.f32 %v1658, %v1678
      %v1699 = vsub.f32 %v1659, %v1679
      %v1700 = vld [vmem:[%s307] sm:$0xff]
      %v1701 = vld [vmem:[%s307 + $0x8] sm:$0xff]
      %v1702 = vld [vmem:[%s307 + $0x10] sm:$0xff]
      %v1703 = vld [vmem:[%s307 + $0x18] sm:$0xff]
      %v1704 = vld [vmem:[%s307 + $0x20] sm:$0xff]
      %v1705 = vld [vmem:[%s307 + $0x28] sm:$0xff]
      %v1706 = vld [vmem:[%s307 + $0x30] sm:$0xff]
      %v1707 = vld [vmem:[%s307 + $0x38] sm:$0xff]
      %v1708 = vld [vmem:[%s307 + $0x40] sm:$0xff]
      %v1709 = vld [vmem:[%s307 + $0x48] sm:$0xff]
      %v1710 = vld [vmem:[%s307 + $0x50] sm:$0xff]
      %v1711 = vld [vmem:[%s307 + $0x58] sm:$0xff]
      %v1712 = vld [vmem:[%s307 + $0x60] sm:$0xff]
      %v1713 = vld [vmem:[%s307 + $0x68] sm:$0xff]
      %v1714 = vld [vmem:[%s307 + $0x70] sm:$0xff]
      %v1715 = vld [vmem:[%s307 + $0x78] sm:$0xff]
      %v1716 = vld [vmem:[%s307 + $0x80] sm:$0xff]
      %v1717 = vld [vmem:[%s307 + $0x88] sm:$0xff]
      %v1718 = vld [vmem:[%s307 + $0x90] sm:$0xff]
      %v1719 = vld [vmem:[%s307 + $0x98] sm:$0xff]
      %v1720 = vadd.f32 %v1680, 1e-05
      %v1721 = vadd.f32 %v1681, 1e-05
      %v1722 = vadd.f32 %v1682, 1e-05
      %v1723 = vadd.f32 %v1683, 1e-05
      %v1724 = vadd.f32 %v1684, 1e-05
      %v1725 = vadd.f32 %v1685, 1e-05
      %v1726 = vadd.f32 %v1686, 1e-05
      %v1727 = vadd.f32 %v1687, 1e-05
      %v1728 = vadd.f32 %v1688, 1e-05
      %v1729 = vadd.f32 %v1689, 1e-05
      %v1730 = vadd.f32 %v1690, 1e-05
      %v1731 = vadd.f32 %v1691, 1e-05
      %v1732 = vadd.f32 %v1692, 1e-05
      %v1733 = vadd.f32 %v1693, 1e-05
      %v1734 = vadd.f32 %v1694, 1e-05
      %v1735 = vadd.f32 %v1695, 1e-05
      %v1736 = vadd.f32 %v1696, 1e-05
      %v1737 = vadd.f32 %v1697, 1e-05
      %v1738 = vadd.f32 %v1698, 1e-05
      %v1739 = vadd.f32 %v1699, 1e-05
      %v1740 = vrsqrt.pop %v1720
      %v1741 = vrsqrt.pop %v1721
      %v1742 = vrsqrt.pop %v1722
      %v1743 = vrsqrt.pop %v1723
      %v1744 = vrsqrt.pop %v1724
      %v1745 = vrsqrt.pop %v1725
      %v1746 = vrsqrt.pop %v1726
      %v1747 = vrsqrt.pop %v1727
      %v1748 = vrsqrt.pop %v1728
      %v1749 = vrsqrt.pop %v1729
      %v1750 = vrsqrt.pop %v1730
      %v1751 = vrsqrt.pop %v1731
      %v1752 = vrsqrt.pop %v1732
      %v1753 = vrsqrt.pop %v1733
      %v1754 = vrsqrt.pop %v1734
      %v1755 = vrsqrt.pop %v1735
      %v1756 = vrsqrt.pop %v1736
      %v1757 = vrsqrt.pop %v1737
      %v1758 = vrsqrt.pop %v1738
      %v1759 = vrsqrt.pop %v1739
      %v1760 = vmul.f32 %v1700, %v1740
      %v1761 = vmul.f32 %v1701, %v1741
      %v1762 = vmul.f32 %v1702, %v1742
      %v1763 = vmul.f32 %v1703, %v1743
      %v1764 = vmul.f32 %v1704, %v1744
      %v1765 = vmul.f32 %v1705, %v1745
      %v1766 = vmul.f32 %v1706, %v1746
      %v1767 = vmul.f32 %v1707, %v1747
      %v1768 = vmul.f32 %v1708, %v1748
      %v1769 = vmul.f32 %v1709, %v1749
      %v1770 = vmul.f32 %v1710, %v1750
      %v1771 = vmul.f32 %v1711, %v1751
      %v1772 = vmul.f32 %v1712, %v1752
      %v1773 = vmul.f32 %v1713, %v1753
      %v1774 = vmul.f32 %v1714, %v1754
      %v1775 = vmul.f32 %v1715, %v1755
      %v1776 = vmul.f32 %v1716, %v1756
      %v1777 = vmul.f32 %v1717, %v1757
      %v1778 = vmul.f32 %v1718, %v1758
      %v1779 = vmul.f32 %v1719, %v1759
      %v1780 = vld [vmem:[%s313] sm:$0xff]
      %v1781 = vld [vmem:[%s313 + $0x8] sm:$0xff]
      %v1782 = vld [vmem:[%s313 + $0x10] sm:$0xff]
      %v1783 = vld [vmem:[%s313 + $0x18] sm:$0xff]
      %v1784 = vld [vmem:[%s313 + $0x20] sm:$0xff]
      %v1785 = vld [vmem:[%s313 + $0x28] sm:$0xff]
      %v1786 = vld [vmem:[%s313 + $0x30] sm:$0xff]
      %v1787 = vld [vmem:[%s313 + $0x38] sm:$0xff]
      %v1788 = vld [vmem:[%s313 + $0x40] sm:$0xff]
      %v1789 = vld [vmem:[%s313 + $0x48] sm:$0xff]
      %v1790 = vld [vmem:[%s313 + $0x50] sm:$0xff]
      %v1791 = vld [vmem:[%s313 + $0x58] sm:$0xff]
      %v1792 = vld [vmem:[%s313 + $0x60] sm:$0xff]
      %v1793 = vld [vmem:[%s313 + $0x68] sm:$0xff]
      %v1794 = vld [vmem:[%s313 + $0x70] sm:$0xff]
      %v1795 = vld [vmem:[%s313 + $0x78] sm:$0xff]
      %v1796 = vld [vmem:[%s313 + $0x80] sm:$0xff]
      %v1797 = vld [vmem:[%s313 + $0x88] sm:$0xff]
      %v1798 = vld [vmem:[%s313 + $0x90] sm:$0xff]
      %v1799 = vld [vmem:[%s313 + $0x98] sm:$0xff]
      %v1800 = vmul.f32 %v1760, %v1620
      %v1801 = vmul.f32 %v1761, %v1621
      %v1802 = vmul.f32 %v1762, %v1622
      %v1803 = vmul.f32 %v1763, %v1623
      %v1804 = vmul.f32 %v1764, %v1624
      %v1805 = vmul.f32 %v1765, %v1625
      %v1806 = vmul.f32 %v1766, %v1626
      %v1807 = vmul.f32 %v1767, %v1627
      %v1808 = vmul.f32 %v1768, %v1628
      %v1809 = vmul.f32 %v1769, %v1629
      %v1810 = vmul.f32 %v1770, %v1630
      %v1811 = vmul.f32 %v1771, %v1631
      %v1812 = vmul.f32 %v1772, %v1632
      %v1813 = vmul.f32 %v1773, %v1633
      %v1814 = vmul.f32 %v1774, %v1634
      %v1815 = vmul.f32 %v1775, %v1635
      %v1816 = vmul.f32 %v1776, %v1636
      %v1817 = vmul.f32 %v1777, %v1637
      %v1818 = vmul.f32 %v1778, %v1638
      %v1819 = vmul.f32 %v1779, %v1639
      %v1820 = vsub.f32 %v1780, %v1800
      %v1821 = vsub.f32 %v1781, %v1801
      %v1822 = vsub.f32 %v1782, %v1802
      %v1823 = vsub.f32 %v1783, %v1803
      %v1824 = vsub.f32 %v1784, %v1804
      %v1825 = vsub.f32 %v1785, %v1805
      %v1826 = vsub.f32 %v1786, %v1806
      %v1827 = vsub.f32 %v1787, %v1807
      %v1828 = vsub.f32 %v1788, %v1808
      %v1829 = vsub.f32 %v1789, %v1809
      %v1830 = vsub.f32 %v1790, %v1810
      %v1831 = vsub.f32 %v1791, %v1811
      %v1832 = vsub.f32 %v1792, %v1812
      %v1833 = vsub.f32 %v1793, %v1813
      %v1834 = vsub.f32 %v1794, %v1814
      %v1835 = vsub.f32 %v1795, %v1815
      %v1836 = vsub.f32 %v1796, %v1816
      %v1837 = vsub.f32 %v1797, %v1817
      %v1838 = vsub.f32 %v1798, %v1818
      %v1839 = vsub.f32 %v1799, %v1819
      %v1840 = vld [vmem:[%s320] sm:$0xff]
      %v1841 = vld [vmem:[%s320 + $0x8] sm:$0xff]
      %v1842 = vld [vmem:[%s320 + $0x10] sm:$0xff]
      %v1843 = vld [vmem:[%s320 + $0x18] sm:$0xff]
      %v1844 = vld [vmem:[%s320 + $0x20] sm:$0xff]
      %v1845 = vld [vmem:[%s320 + $0x28] sm:$0xff]
      %v1846 = vld [vmem:[%s320 + $0x30] sm:$0xff]
      %v1847 = vld [vmem:[%s320 + $0x38] sm:$0xff]
      %v1848 = vld [vmem:[%s320 + $0x40] sm:$0xff]
      %v1849 = vld [vmem:[%s320 + $0x48] sm:$0xff]
      %v1850 = vld [vmem:[%s320 + $0x50] sm:$0xff]
      %v1851 = vld [vmem:[%s320 + $0x58] sm:$0xff]
      %v1852 = vld [vmem:[%s320 + $0x60] sm:$0xff]
      %v1853 = vld [vmem:[%s320 + $0x68] sm:$0xff]
      %v1854 = vld [vmem:[%s320 + $0x70] sm:$0xff]
      %v1855 = vld [vmem:[%s320 + $0x78] sm:$0xff]
      %v1856 = vld [vmem:[%s320 + $0x80] sm:$0xff]
      %v1857 = vld [vmem:[%s320 + $0x88] sm:$0xff]
      %v1858 = vld [vmem:[%s320 + $0x90] sm:$0xff]
      %v1859 = vld [vmem:[%s320 + $0x98] sm:$0xff]
      %v1860 = vld [vmem:[%s320 + $0xa0] sm:$0xff]
      %v1861 = vld [vmem:[%s320 + $0xa8] sm:$0xff]
      %v1862 = vld [vmem:[%s320 + $0xb0] sm:$0xff]
      %v1863 = vld [vmem:[%s320 + $0xb8] sm:$0xff]
      %v1864 = vld [vmem:[%s320 + $0xc0] sm:$0xff]
      %v1865 = vld [vmem:[%s320 + $0xc8] sm:$0xff]
      %v1866 = vld [vmem:[%s320 + $0xd0] sm:$0xff]
      %v1867 = vld [vmem:[%s320 + $0xd8] sm:$0xff]
      %v1868 = vld [vmem:[%s320 + $0xe0] sm:$0xff]
      %v1869 = vld [vmem:[%s320 + $0xe8] sm:$0xff]
      %v1870 = vld [vmem:[%s320 + $0xf0] sm:$0xff]
      %v1871 = vld [vmem:[%s320 + $0xf8] sm:$0xff]
      %v1872 = vld [vmem:[%s320 + $0x100] sm:$0xff]
      %v1873 = vld [vmem:[%s320 + $0x108] sm:$0xff]
      %v1874 = vld [vmem:[%s320 + $0x110] sm:$0xff]
      %v1875 = vld [vmem:[%s320 + $0x118] sm:$0xff]
      %v1876 = vld [vmem:[%s320 + $0x120] sm:$0xff]
      %v1877 = vld [vmem:[%s320 + $0x128] sm:$0xff]
      %v1878 = vld [vmem:[%s320 + $0x130] sm:$0xff]
      %v1879 = vld [vmem:[%s320 + $0x138] sm:$0xff]
      %1881 = vset.pattern.permute.xlu0 0
      %1882 = vperm.xlu0 %1881, %v1760
      %v1883 = vpop.permute.xlu0 %1882
      %1886 = vset.pattern.permute.xlu0 0
      %1887 = vperm.xlu0 %1886, %v1761
      %v1888 = vpop.permute.xlu0 %1887
      %1891 = vset.pattern.permute.xlu0 0
      %1892 = vperm.xlu0 %1891, %v1762
      %v1893 = vpop.permute.xlu0 %1892
      %1896 = vset.pattern.permute.xlu0 0
      %1897 = vperm.xlu0 %1896, %v1763
      %v1898 = vpop.permute.xlu0 %1897
      %1901 = vset.pattern.permute.xlu0 0
      %1902 = vperm.xlu0 %1901, %v1764
      %v1903 = vpop.permute.xlu0 %1902
      %1906 = vset.pattern.permute.xlu0 0
      %1907 = vperm.xlu0 %1906, %v1765
      %v1908 = vpop.permute.xlu0 %1907
      %1911 = vset.pattern.permute.xlu0 0
      %1912 = vperm.xlu0 %1911, %v1766
      %v1913 = vpop.permute.xlu0 %1912
      %1916 = vset.pattern.permute.xlu0 0
      %1917 = vperm.xlu0 %1916, %v1767
      %v1918 = vpop.permute.xlu0 %1917
      %1921 = vset.pattern.permute.xlu0 0
      %1922 = vperm.xlu0 %1921, %v1768
      %v1923 = vpop.permute.xlu0 %1922
      %1926 = vset.pattern.permute.xlu0 0
      %1927 = vperm.xlu0 %1926, %v1769
      %v1928 = vpop.permute.xlu0 %1927
      %1931 = vset.pattern.permute.xlu0 0
      %1932 = vperm.xlu0 %1931, %v1770
      %v1933 = vpop.permute.xlu0 %1932
      %1936 = vset.pattern.permute.xlu0 0
      %1937 = vperm.xlu0 %1936, %v1771
      %v1938 = vpop.permute.xlu0 %1937
      %1941 = vset.pattern.permute.xlu0 0
      %1942 = vperm.xlu0 %1941, %v1772
      %v1943 = vpop.permute.xlu0 %1942
      %1946 = vset.pattern.permute.xlu0 0
      %1947 = vperm.xlu0 %1946, %v1773
      %v1948 = vpop.permute.xlu0 %1947
      %1951 = vset.pattern.permute.xlu0 0
      %1952 = vperm.xlu0 %1951, %v1774
      %v1953 = vpop.permute.xlu0 %1952
      %1956 = vset.pattern.permute.xlu0 0
      %1957 = vperm.xlu0 %1956, %v1775
      %v1958 = vpop.permute.xlu0 %1957
      %1961 = vset.pattern.permute.xlu0 0
      %1962 = vperm.xlu0 %1961, %v1776
      %v1963 = vpop.permute.xlu0 %1962
      %1966 = vset.pattern.permute.xlu0 0
      %1967 = vperm.xlu0 %1966, %v1777
      %v1968 = vpop.permute.xlu0 %1967
      %1971 = vset.pattern.permute.xlu0 0
      %1972 = vperm.xlu0 %1971, %v1778
      %v1973 = vpop.permute.xlu0 %1972
      %1976 = vset.pattern.permute.xlu0 0
      %1977 = vperm.xlu0 %1976, %v1779
      %v1978 = vpop.permute.xlu0 %1977
      %v1980 = vmul.f32 %v1883, %v1342
      %v1981 = vmul.f32 %v1883, %v1344
      %v1982 = vmul.f32 %v1888, %v1348
      %v1983 = vmul.f32 %v1888, %v1350
      %v1984 = vmul.f32 %v1893, %v1354
      %v1985 = vmul.f32 %v1893, %v1356
      %v1986 = vmul.f32 %v1898, %v1360
      %v1987 = vmul.f32 %v1898, %v1362
      %v1988 = vmul.f32 %v1903, %v1366
      %v1989 = vmul.f32 %v1903, %v1368
      %v1990 = vmul.f32 %v1908, %v1372
      %v1991 = vmul.f32 %v1908, %v1374
      %v1992 = vmul.f32 %v1913, %v1378
      %v1993 = vmul.f32 %v1913, %v1380
      %v1994 = vmul.f32 %v1918, %v1384
      %v1995 = vmul.f32 %v1918, %v1386
      %v1996 = vmul.f32 %v1923, %v1390
      %v1997 = vmul.f32 %v1923, %v1392
      %v1998 = vmul.f32 %v1928, %v1396
      %v1999 = vmul.f32 %v1928, %v1398
      %v2000 = vmul.f32 %v1933, %v1402
      %v2001 = vmul.f32 %v1933, %v1404
      %v2002 = vmul.f32 %v1938, %v1408
      %v2003 = vmul.f32 %v1938, %v1410
      %v2004 = vmul.f32 %v1943, %v1414
      %v2005 = vmul.f32 %v1943, %v1416
      %v2006 = vmul.f32 %v1948, %v1420
      %v2007 = vmul.f32 %v1948, %v1422
      %v2008 = vmul.f32 %v1953, %v1426
      %v2009 = vmul.f32 %v1953, %v1428
      %v2010 = vmul.f32 %v1958, %v1432
      %v2011 = vmul.f32 %v1958, %v1434
      %v2012 = vmul.f32 %v1963, %v1438
      %v2013 = vmul.f32 %v1963, %v1440
      %v2014 = vmul.f32 %v1968, %v1444
      %v2015 = vmul.f32 %v1968, %v1446
      %v2016 = vmul.f32 %v1973, %v1450
      %v2017 = vmul.f32 %v1973, %v1452
      %v2018 = vmul.f32 %v1978, %v1456
      %v2019 = vmul.f32 %v1978, %v1458
      %v2020 = vadd.f32 %v1840, %v1980
      %v2021 = vadd.f32 %v1841, %v1981
      %v2022 = vadd.f32 %v1842, %v1982
      %v2023 = vadd.f32 %v1843, %v1983
      %v2024 = vadd.f32 %v1844, %v1984
      %v2025 = vadd.f32 %v1845, %v1985
      %v2026 = vadd.f32 %v1846, %v1986
      %v2027 = vadd.f32 %v1847, %v1987
      %v2028 = vadd.f32 %v1848, %v1988
      %v2029 = vadd.f32 %v1849, %v1989
      %v2030 = vadd.f32 %v1850, %v1990
      %v2031 = vadd.f32 %v1851, %v1991
      %v2032 = vadd.f32 %v1852, %v1992
      %v2033 = vadd.f32 %v1853, %v1993
      %v2034 = vadd.f32 %v1854, %v1994
      %v2035 = vadd.f32 %v1855, %v1995
      %v2036 = vadd.f32 %v1856, %v1996
      %v2037 = vadd.f32 %v1857, %v1997
      %v2038 = vadd.f32 %v1858, %v1998
      %v2039 = vadd.f32 %v1859, %v1999
      %v2040 = vadd.f32 %v1860, %v2000
      %v2041 = vadd.f32 %v1861, %v2001
      %v2042 = vadd.f32 %v1862, %v2002
      %v2043 = vadd.f32 %v1863, %v2003
      %v2044 = vadd.f32 %v1864, %v2004
      %v2045 = vadd.f32 %v1865, %v2005
      %v2046 = vadd.f32 %v1866, %v2006
      %v2047 = vadd.f32 %v1867, %v2007
      %v2048 = vadd.f32 %v1868, %v2008
      %v2049 = vadd.f32 %v1869, %v2009
      %v2050 = vadd.f32 %v1870, %v2010
      %v2051 = vadd.f32 %v1871, %v2011
      %v2052 = vadd.f32 %v1872, %v2012
      %v2053 = vadd.f32 %v1873, %v2013
      %v2054 = vadd.f32 %v1874, %v2014
      %v2055 = vadd.f32 %v1875, %v2015
      %v2056 = vadd.f32 %v1876, %v2016
      %v2057 = vadd.f32 %v1877, %v2017
      %v2058 = vadd.f32 %v1878, %v2018
      %v2059 = vadd.f32 %v1879, %v2019
      %2061 = vset.pattern.permute.xlu0 0
      %2062 = vperm.xlu0 %2061, %v1820
      %v2063 = vpop.permute.xlu0 %2062
      %2066 = vset.pattern.permute.xlu0 0
      %2067 = vperm.xlu0 %2066, %v1821
      %v2068 = vpop.permute.xlu0 %2067
      %2071 = vset.pattern.permute.xlu0 0
      %2072 = vperm.xlu0 %2071, %v1822
      %v2073 = vpop.permute.xlu0 %2072
      %2076 = vset.pattern.permute.xlu0 0
      %2077 = vperm.xlu0 %2076, %v1823
      %v2078 = vpop.permute.xlu0 %2077
      %2081 = vset.pattern.permute.xlu0 0
      %2082 = vperm.xlu0 %2081, %v1824
      %v2083 = vpop.permute.xlu0 %2082
      %2086 = vset.pattern.permute.xlu0 0
      %2087 = vperm.xlu0 %2086, %v1825
      %v2088 = vpop.permute.xlu0 %2087
      %2091 = vset.pattern.permute.xlu0 0
      %2092 = vperm.xlu0 %2091, %v1826
      %v2093 = vpop.permute.xlu0 %2092
      %2096 = vset.pattern.permute.xlu0 0
      %2097 = vperm.xlu0 %2096, %v1827
      %v2098 = vpop.permute.xlu0 %2097
      %2101 = vset.pattern.permute.xlu0 0
      %2102 = vperm.xlu0 %2101, %v1828
      %v2103 = vpop.permute.xlu0 %2102
      %2106 = vset.pattern.permute.xlu0 0
      %2107 = vperm.xlu0 %2106, %v1829
      %v2108 = vpop.permute.xlu0 %2107
      %2111 = vset.pattern.permute.xlu0 0
      %2112 = vperm.xlu0 %2111, %v1830
      %v2113 = vpop.permute.xlu0 %2112
      %2116 = vset.pattern.permute.xlu0 0
      %2117 = vperm.xlu0 %2116, %v1831
      %v2118 = vpop.permute.xlu0 %2117
      %2121 = vset.pattern.permute.xlu0 0
      %2122 = vperm.xlu0 %2121, %v1832
      %v2123 = vpop.permute.xlu0 %2122
      %2126 = vset.pattern.permute.xlu0 0
      %2127 = vperm.xlu0 %2126, %v1833
      %v2128 = vpop.permute.xlu0 %2127
      %2131 = vset.pattern.permute.xlu0 0
      %2132 = vperm.xlu0 %2131, %v1834
      %v2133 = vpop.permute.xlu0 %2132
      %2136 = vset.pattern.permute.xlu0 0
      %2137 = vperm.xlu0 %2136, %v1835
      %v2138 = vpop.permute.xlu0 %2137
      %2141 = vset.pattern.permute.xlu0 0
      %2142 = vperm.xlu0 %2141, %v1836
      %v2143 = vpop.permute.xlu0 %2142
      %2146 = vset.pattern.permute.xlu0 0
      %2147 = vperm.xlu0 %2146, %v1837
      %v2148 = vpop.permute.xlu0 %2147
      %2151 = vset.pattern.permute.xlu0 0
      %2152 = vperm.xlu0 %2151, %v1838
      %v2153 = vpop.permute.xlu0 %2152
      %2156 = vset.pattern.permute.xlu0 0
      %2157 = vperm.xlu0 %2156, %v1839
      %v2158 = vpop.permute.xlu0 %2157
      %v2160 = vadd.f32 %v2020, %v2063
      %v2161 = vadd.f32 %v2021, %v2063
      %v2162 = vadd.f32 %v2022, %v2068
      %v2163 = vadd.f32 %v2023, %v2068
      %v2164 = vadd.f32 %v2024, %v2073
      %v2165 = vadd.f32 %v2025, %v2073
      %v2166 = vadd.f32 %v2026, %v2078
      %v2167 = vadd.f32 %v2027, %v2078
      %v2168 = vadd.f32 %v2028, %v2083
      %v2169 = vadd.f32 %v2029, %v2083
      %v2170 = vadd.f32 %v2030, %v2088
      %v2171 = vadd.f32 %v2031, %v2088
      %v2172 = vadd.f32 %v2032, %v2093
      %v2173 = vadd.f32 %v2033, %v2093
      %v2174 = vadd.f32 %v2034, %v2098
      %v2175 = vadd.f32 %v2035, %v2098
      %v2176 = vadd.f32 %v2036, %v2103
      %v2177 = vadd.f32 %v2037, %v2103
      %v2178 = vadd.f32 %v2038, %v2108
      %v2179 = vadd.f32 %v2039, %v2108
      %v2180 = vadd.f32 %v2040, %v2113
      %v2181 = vadd.f32 %v2041, %v2113
      %v2182 = vadd.f32 %v2042, %v2118
      %v2183 = vadd.f32 %v2043, %v2118
      %v2184 = vadd.f32 %v2044, %v2123
      %v2185 = vadd.f32 %v2045, %v2123
      %v2186 = vadd.f32 %v2046, %v2128
      %v2187 = vadd.f32 %v2047, %v2128
      %v2188 = vadd.f32 %v2048, %v2133
      %v2189 = vadd.f32 %v2049, %v2133
      %v2190 = vadd.f32 %v2050, %v2138
      %v2191 = vadd.f32 %v2051, %v2138
      %v2192 = vadd.f32 %v2052, %v2143
      %v2193 = vadd.f32 %v2053, %v2143
      %v2194 = vadd.f32 %v2054, %v2148
      %v2195 = vadd.f32 %v2055, %v2148
      %v2196 = vadd.f32 %v2056, %v2153
      %v2197 = vadd.f32 %v2057, %v2153
      %v2198 = vadd.f32 %v2058, %v2158
      %v2199 = vadd.f32 %v2059, %v2158
      %2200 = vst [vmem:[%s327] sm:$0xff] %v2160
      %2201 = vst [vmem:[%s327 + $0x8] sm:$0xff] %v2161
      %2202 = vst [vmem:[%s327 + $0x10] sm:$0xff] %v2162
      %2203 = vst [vmem:[%s327 + $0x18] sm:$0xff] %v2163
      %2204 = vst [vmem:[%s327 + $0x20] sm:$0xff] %v2164
      %2205 = vst [vmem:[%s327 + $0x28] sm:$0xff] %v2165
      %2206 = vst [vmem:[%s327 + $0x30] sm:$0xff] %v2166
      %2207 = vst [vmem:[%s327 + $0x38] sm:$0xff] %v2167
      %2208 = vst [vmem:[%s327 + $0x40] sm:$0xff] %v2168
      %2209 = vst [vmem:[%s327 + $0x48] sm:$0xff] %v2169
      %2210 = vst [vmem:[%s327 + $0x50] sm:$0xff] %v2170
      %2211 = vst [vmem:[%s327 + $0x58] sm:$0xff] %v2171
      %2212 = vst [vmem:[%s327 + $0x60] sm:$0xff] %v2172
      %2213 = vst [vmem:[%s327 + $0x68] sm:$0xff] %v2173
      %2214 = vst [vmem:[%s327 + $0x70] sm:$0xff] %v2174
      %2215 = vst [vmem:[%s327 + $0x78] sm:$0xff] %v2175
      %2216 = vst [vmem:[%s327 + $0x80] sm:$0xff] %v2176
      %2217 = vst [vmem:[%s327 + $0x88] sm:$0xff] %v2177
      %2218 = vst [vmem:[%s327 + $0x90] sm:$0xff] %v2178
      %2219 = vst [vmem:[%s327 + $0x98] sm:$0xff] %v2179
      %2220 = vst [vmem:[%s327 + $0xa0] sm:$0xff] %v2180
      %2221 = vst [vmem:[%s327 + $0xa8] sm:$0xff] %v2181
      %2222 = vst [vmem:[%s327 + $0xb0] sm:$0xff] %v2182
      %2223 = vst [vmem:[%s327 + $0xb8] sm:$0xff] %v2183
      %2224 = vst [vmem:[%s327 + $0xc0] sm:$0xff] %v2184
      %2225 = vst [vmem:[%s327 + $0xc8] sm:$0xff] %v2185
      %2226 = vst [vmem:[%s327 + $0xd0] sm:$0xff] %v2186
      %2227 = vst [vmem:[%s327 + $0xd8] sm:$0xff] %v2187
      %2228 = vst [vmem:[%s327 + $0xe0] sm:$0xff] %v2188
      %2229 = vst [vmem:[%s327 + $0xe8] sm:$0xff] %v2189
      %2230 = vst [vmem:[%s327 + $0xf0] sm:$0xff] %v2190
      %2231 = vst [vmem:[%s327 + $0xf8] sm:$0xff] %v2191
      %2232 = vst [vmem:[%s327 + $0x100] sm:$0xff] %v2192
      %2233 = vst [vmem:[%s327 + $0x108] sm:$0xff] %v2193
      %2234 = vst [vmem:[%s327 + $0x110] sm:$0xff] %v2194
      %2235 = vst [vmem:[%s327 + $0x118] sm:$0xff] %v2195
      %2236 = vst [vmem:[%s327 + $0x120] sm:$0xff] %v2196
      %2237 = vst [vmem:[%s327 + $0x128] sm:$0xff] %v2197
      %2238 = vst [vmem:[%s327 + $0x130] sm:$0xff] %v2198
      %2239 = vst [vmem:[%s327 + $0x138] sm:$0xff] %v2199
      %s2240 = smul.u32 20, %s17
      %p2241 = scmp.lt.s32.totalorder %s2240, 39
      %s2242 = scalar_select %p2241, %s2240, 39
      %s2243 = smul.addr %s2242, 2
      %s2244 = smul.addr %s2243, 8
      %s2245 = scalar_lea.vmem %s6, %s2244
      // Predicated region
      $region45: #{fused_forward.1} parent=43 // pred_check
        %p2246 = pneg %p181
      $region46: #{fused_forward.1} parent=43 // pred_check_branch
        %2248 = sbr.rel (%p2246) target = $region48
      $region47: #{fused_forward.1} parent=43 // pred_region
        %s2249 = smul.u32 20, %s17
      $region48: #{fused_forward.1} parent=43 // pred_fallthru
        _
    $region44: #{fused_forward.1} parent=5 // pred_fallthru
      _
    %p2250 = scmp.le.s32.totalorder 2, %s12
    // Predicated region
    $region49: #{fused_forward.1} parent=5 // pred_check
      %p2251 = pneg %p2250
    $region50: #{fused_forward.1} parent=5 // pred_check_branch
      %2253 = sbr.rel (%p2251) target = $region52
    $region51: #{fused_forward.1} parent=5 // pred_region
      %s2254 = ssub.s32 %s12, 2
      // Predicated region
      $region53: #{fused_forward.1} parent=51 // pred_check
        %p2255 = pneg %p187
      $region54: #{fused_forward.1} parent=51 // pred_check_branch
        %2257 = sbr.rel (%p2255) target = $region56
      $region55: #{fused_forward.1} parent=51 // pred_region
        %s2258 = smul.u32 20, %s18
        %p2259 = scmp.lt.s32.totalorder %s2258, 39
        %s2260 = scalar_select %p2259, %s2258, 39
        %s2261 = smul.addr %s2260, 2
        %s2262 = smul.addr %s2261, 8
        %s2263 = scalar_lea.vmem %s6, %s2262
      $region56: #{fused_forward.1} parent=51 // pred_fallthru
        _
    $region52: #{fused_forward.1} parent=5 // pred_fallthru
      _
  $region6: #{fused_forward.1} parent=0 // loop_footer
    %s16 = sadd.s32 1, %s12
  $region7: #{fused_forward.1} parent=0 // loop_footer_branch
    %11 = sbr.rel target = $region3
  $region8: #{fused_forward.1} parent=0 // loop_exit
    _

</llo_original>
